<compile_context>
chip_gen: v7x
topology: tpu7x:2x2x1
jax: 0.10.0
libtpu: 0.0.40
codegen_flags: <defaults>
</compile_context>

<pallas_src>
import jax
import jax.numpy as jnp
from jax.experimental import pallas as pl
from jax.experimental.pallas import tpu as pltpu

# ----------------------------- configuration --------------------------------
BATCH = 2
CHANNELS = 3
IMG_SIZE = 16          # == max_img_size -> pos-embed interpolation is identity
PATCH = 8
EMBED_DIM = 32
NUM_HEADS = 2
HEAD_DIM = EMBED_DIM // NUM_HEADS
MLP_HIDDEN = 4 * EMBED_DIM
DEPTH = 2
NUM_CLS_TOKENS = 1
NUM_REGISTERS = 0      # register_multiple = 0
NUM_SKIP = NUM_CLS_TOKENS + NUM_REGISTERS
NUM_PATCHES = (IMG_SIZE // PATCH) ** 2
SEQ_LEN = NUM_SKIP + NUM_PATCHES
SEQ_PAD = ((SEQ_LEN + 7) // 8) * 8           # 8-sublane aligned sequence length
PATCH_DIM = CHANNELS * PATCH * PATCH
LN_EPS = 1e-6
LANES = 128
SEG = 128                                    # lane-aligned segment width in blobs

# get_default_conditioner(): OpenAI CLIP normalization
CLIP_MEAN = jnp.array([0.48145466, 0.4578275, 0.40821073], dtype=jnp.float32)
CLIP_STD = jnp.array([0.26862954, 0.26130258, 0.27577711], dtype=jnp.float32)


# ------------------------------- kernel --------------------------------------
def encoder_kernel(patches_ref, pw_ref, base_ref, wcat_ref, vec_ref,
                   nw_ref, nb_ref, o_ref):
    """Process ONE image (SEQ_PAD rows) per grid step."""
    f32, bf16 = jnp.float32, jnp.bfloat16
    D, NP, hd = EMBED_DIM, SEQ_PAD, HEAD_DIM

    def norm(v):  # LayerNorm without affine (affine folded into next matmul)
        mu = jnp.mean(v, axis=-1, keepdims=True)
        var = jnp.mean(jnp.square(v - mu), axis=-1, keepdims=True)
        return (v - mu) * jax.lax.rsqrt(var + LN_EPS)

    # patch embed (conditioner folded into pw, patch bias + cls + pos in base);
    # pad rows of patches are zero -> pad rows of x are zero.
    x = jnp.dot(patches_ref[...], pw_ref[...],
                preferred_element_type=f32) + base_ref[...]        # (NP, D) f32

    # mask padded key columns out of the softmax (static, hoisted once)
    kmask = jnp.where(
        jax.lax.broadcasted_iota(jnp.int32, (1, NP), 1) < SEQ_LEN,
        0.0, -1e30).astype(f32)

    for d in range(DEPTH):
        qkv_w = wcat_ref[d, :, 0:3 * D]                  # (D, 3D) bf16
        proj_w = wcat_ref[d, :, SEG:SEG + D]             # (D, D)  bf16
        fc1_w = wcat_ref[d, :, 2 * SEG:2 * SEG + MLP_HIDDEN]
        fc2_wT = wcat_ref[d, :, 3 * SEG:3 * SEG + MLP_HIDDEN]
        qkv_b = vec_ref[d, :, 0:3 * D]                   # (1, 3D) f32
        proj_b = vec_ref[d, :, SEG:SEG + D]
        fc1_b = vec_ref[d, :, 2 * SEG:2 * SEG + MLP_HIDDEN]
        fc2_b = vec_ref[d, :, 3 * SEG:3 * SEG + D]

        # --- attention (LN1 affine + attn scale pre-folded into qkv_w/qkv_b) ---
        qkv = jnp.dot(norm(x).astype(bf16), qkv_w,
                      preferred_element_type=f32) + qkv_b          # (NP, 3D)
        heads = []
        for hh in range(NUM_HEADS):
            c = hh * hd
            q = qkv[:, c:c + hd].astype(bf16)
            k = qkv[:, D + c:D + c + hd].astype(bf16)
            v = qkv[:, 2 * D + c:2 * D + c + hd].astype(bf16)
            s = jax.lax.dot_general(q, k, (((1,), (1,)), ((), ())),
                                    preferred_element_type=f32)    # (NP, NP)
            s = s + kmask
            s = s - jnp.max(s, axis=-1, keepdims=True)
            p = jnp.exp(s)
            p = p * pl.reciprocal(jnp.sum(p, axis=-1, keepdims=True),
                                  approx=True)
            heads.append(jnp.dot(p.astype(bf16), v,
                                 preferred_element_type=f32))      # (NP, hd)
        attn = jnp.concatenate(heads, axis=-1)                     # (NP, D)
        x = x + jnp.dot(attn.astype(bf16), proj_w,
                        preferred_element_type=f32) + proj_b

        # --- MLP (LN2 affine pre-folded into fc1_w/fc1_b) ---
        m = jnp.dot(norm(x).astype(bf16), fc1_w,
                    preferred_element_type=f32) + fc1_b            # (NP, 4D)
        # TODO(synk): timm ViT uses exact erf-GELU; tanh approximation used here.
        m = jax.nn.gelu(m, approximate=True)
        m = jax.lax.dot_general(m.astype(bf16), fc2_wT,
                                (((1,), (1,)), ((), ())),
                                preferred_element_type=f32) + fc2_b
        x = x + m

    # final LayerNorm (model.norm) — keeps its own affine
    y = norm(x) * nw_ref[...] + nb_ref[...]                        # (NP, D)
    # lane-dense writeback: pad feature dim to 128 lanes -> unmasked full vst
    o_ref[...] = jnp.concatenate(
        [y, jnp.zeros((NP, LANES - D), f32)], axis=-1)


# ------------------------------ pallas wrapper --------------------------------
def fused_encoder_call(patches, pk):
    """patches: (B, SEQ_PAD, PATCH_DIM) bf16, rows already at final positions."""
    B = patches.shape[0]
    # Shard the image axis across TensorCores only when there is enough work
    # (review: do NOT cross-core shard at B=2 sizes).
    dims = ("parallel",) if B >= 8 else ("arbitrary",)

    out = pl.pallas_call(
        encoder_kernel,
        out_shape=jax.ShapeDtypeStruct((B, SEQ_PAD, LANES), jnp.float32),
        grid=(B,),
        in_specs=[
            pl.BlockSpec((None, SEQ_PAD, PATCH_DIM), lambda i: (i, 0, 0)),  # patches
            pl.BlockSpec((PATCH_DIM, EMBED_DIM), lambda i: (0, 0)),         # patch_w
            pl.BlockSpec((SEQ_PAD, EMBED_DIM), lambda i: (0, 0)),           # base
            pl.BlockSpec((DEPTH, EMBED_DIM, 4 * SEG), lambda i: (0, 0, 0)), # wcat
            pl.BlockSpec((DEPTH, 1, 4 * SEG), lambda i: (0, 0, 0)),         # vec
            pl.BlockSpec((1, EMBED_DIM), lambda i: (0, 0)),                 # norm_w
            pl.BlockSpec((1, EMBED_DIM), lambda i: (0, 0)),                 # norm_b
        ],
        out_specs=pl.BlockSpec((None, SEQ_PAD, LANES), lambda i: (i, 0, 0)),
        compiler_params=pltpu.CompilerParams(dimension_semantics=dims),
    )(patches, pk["patch_w"], pk["base"], pk["wcat"], pk["vec"],
      pk["norm_w"], pk["norm_b"])
    return out[..., :EMBED_DIM]                         # (B, SEQ_PAD, D)


# ------------------------------- parameters ----------------------------------
def init_params(key):
    K = PATCH_DIM
    keys = jax.random.split(key, 4 + DEPTH)
    n = lambda k, shp: 0.02 * jax.random.normal(k, shp, dtype=jnp.float32)
    params = {
        "patch_w": n(keys[0], (K, EMBED_DIM)),
        "patch_b": jnp.zeros((1, EMBED_DIM), jnp.float32),
        "pos": n(keys[1], (NUM_PATCHES, EMBED_DIM)),
        "cls": n(keys[2], (NUM_CLS_TOKENS, EMBED_DIM)),
        "norm_w": jnp.ones((1, EMBED_DIM), jnp.float32),
        "norm_b": jnp.zeros((1, EMBED_DIM), jnp.float32),
        "blocks": [],
    }
    for i in range(DEPTH):
        bk = jax.random.split(keys[3 + i], 4)
        params["blocks"].append(dict(
            ln1_w=jnp.ones((1, EMBED_DIM), jnp.float32),
            ln1_b=jnp.zeros((1, EMBED_DIM), jnp.float32),
            qkv_w=n(bk[0], (EMBED_DIM, 3 * EMBED_DIM)),
            qkv_b=jnp.zeros((1, 3 * EMBED_DIM), jnp.float32),
            proj_w=n(bk[1], (EMBED_DIM, EMBED_DIM)),
            proj_b=jnp.zeros((1, EMBED_DIM), jnp.float32),
            ln2_w=jnp.ones((1, EMBED_DIM), jnp.float32),
            ln2_b=jnp.zeros((1, EMBED_DIM), jnp.float32),
            fc1_w=n(bk[2], (EMBED_DIM, MLP_HIDDEN)),
            fc1_b=jnp.zeros((1, MLP_HIDDEN), jnp.float32),
            fc2_w=n(bk[3], (MLP_HIDDEN, EMBED_DIM)),
            fc2_b=jnp.zeros((1, EMBED_DIM), jnp.float32),
        ))
    return params


def _padc(a, width):
    return jnp.pad(a, ((0, 0), (0, width - a.shape[1])))


def pack_params(params):
    """One-time algebraic folding + 128-lane-aligned weight packing."""
    # fold input conditioner (x - mean) / std into the patch-embed weights:
    #   W' = diag(istd) @ W,  b' = b - (mean*istd) @ W
    mean_vec = jnp.repeat(CLIP_MEAN, PATCH * PATCH)                 # (K,)
    istd_vec = 1.0 / jnp.repeat(CLIP_STD, PATCH * PATCH)            # (K,)
    w = params["patch_w"]
    patch_w = w * istd_vec[:, None]
    patch_b = params["patch_b"] - (mean_vec * istd_vec)[None, :] @ w

    # base sequence rows: [cls | pos + patch_bias | zero padding]
    base = jnp.zeros((SEQ_PAD, EMBED_DIM), jnp.float32)
    base = base.at[0:NUM_CLS_TOKENS].set(params["cls"])
    base = base.at[NUM_SKIP:NUM_SKIP + NUM_PATCHES].set(params["pos"] + patch_b)

    scale = float(HEAD_DIM) ** -0.5
    wcats, vecs = [], []
    for blk in params["blocks"]:
        # fold attention scale into the Q columns
        qkv_w = blk["qkv_w"].at[:, :EMBED_DIM].multiply(scale)
        qkv_b = blk["qkv_b"].at[:, :EMBED_DIM].multiply(scale)
        # fold LN1 affine into qkv:  LN(x)@W + b == norm(x)@(w1*W) + (b1@W + b)
        qkv_b = qkv_b + blk["ln1_b"] @ qkv_w
        qkv_w = blk["ln1_w"].T * qkv_w
        # fold LN2 affine into fc1
        fc1_b = blk["fc1_b"] + blk["ln2_b"] @ blk["fc1_w"]
        fc1_w = blk["ln2_w"].T * blk["fc1_w"]

        wcats.append(jnp.concatenate(
            [_padc(qkv_w, SEG), _padc(blk["proj_w"], SEG),
             _padc(fc1_w, SEG), _padc(blk["fc2_w"].T, SEG)], axis=1))  # (D, 4*SEG)
        vecs.append(jnp.concatenate(
            [_padc(qkv_b, SEG), _padc(blk["proj_b"], SEG),
             _padc(fc1_b, SEG), _padc(blk["fc2_b"], SEG)], axis=1))    # (1, 4*SEG)

    return {
        "patch_w": patch_w.astype(jnp.bfloat16),            # (K, D)
        "base": base,                                        # (SEQ_PAD, D) f32
        "wcat": jnp.stack(wcats).astype(jnp.bfloat16),       # (DEPTH, D, 4*SEG)
        "vec": jnp.stack(vecs),                              # (DEPTH, 1, 4*SEG) f32
        "norm_w": params["norm_w"],
        "norm_b": params["norm_b"],
    }


# -------------------------------- forward ------------------------------------
@jax.jit
def unit_model_encoder_forward(x, packed):
    """x: (B, C, H, W) float32, NCHW like PyTorch."""
    B, C, H, W = x.shape
    Hp, Wp = H // PATCH, W // PATCH
    num_patches = Hp * Wp

    # glue: patchify with (c, ph, pw) flatten order as in ViTPatchGenerator.
    # TODO(synk): pos-embed interpolation assumed identity (H == max_img_size).
    p = x.reshape(B, C, Hp, PATCH, Wp, PATCH)
    p = p.transpose(0, 2, 4, 1, 3, 5)                       # B, Hp, Wp, C, P, P
    p = p.reshape(B, num_patches, PATCH_DIM)
    # place patch rows at their final sequence positions (cls offset) and pad
    # to the 8-sublane-aligned sequence length; zero rows stay zero through
    # the patch matmul so the kernel never shifts rows.
    p = jnp.pad(p, ((0, 0),
                    (NUM_SKIP, SEQ_PAD - NUM_SKIP - num_patches),
                    (0, 0)))
    p = p.astype(jnp.bfloat16)                              # halve DMA bytes

    out = fused_encoder_call(p, packed)                     # (B, SEQ_PAD, D)

    cls_tokens = out[:, 0]                                  # (B, D)
    spatial_tokens = out[:, NUM_SKIP:NUM_SKIP + num_patches]  # (B, num_patches, D)
    return cls_tokens, spatial_tokens


# --------------------------------- main ---------------------------------------
if __name__ == "__main__":
    key = jax.random.PRNGKey(0)
    k_img, k_par = jax.random.split(key)
    # image-like input in [0, 1]
    x = jax.random.uniform(k_img, (BATCH, CHANNELS, IMG_SIZE, IMG_SIZE),
                           dtype=jnp.float32)
    params = init_params(k_par)
    packed = pack_params(params)

    cls_tokens, spatial_tokens = unit_model_encoder_forward(x, packed)
    jax.block_until_ready((cls_tokens, spatial_tokens))

    assert cls_tokens.shape == (BATCH, EMBED_DIM)
    assert spatial_tokens.shape == (BATCH, NUM_PATCHES, EMBED_DIM)
    assert jnp.all(jnp.isfinite(cls_tokens)) and jnp.all(jnp.isfinite(spatial_tokens))
    print("KERNEL_OK")
</pallas_src>

<mosaic_0001>
module attributes {stable_mosaic.version = 11 : i64} {
  func.func @encoder_kernel(%arg0: i32, %arg1: memref<1x8x192xbf16, #tpu.memory_space<vmem>>, %arg2: memref<192x32xbf16, #tpu.memory_space<vmem>>, %arg3: memref<8x32xf32, #tpu.memory_space<vmem>>, %arg4: memref<2x32x512xbf16, #tpu.memory_space<vmem>>, %arg5: memref<2x1x512xf32, #tpu.memory_space<vmem>>, %arg6: memref<1x32xf32, #tpu.memory_space<vmem>>, %arg7: memref<1x32xf32, #tpu.memory_space<vmem>>, %arg8: memref<1x8x128xf32, #tpu.memory_space<vmem>>) attributes {dimension_semantics = [#tpu.dimension_semantics<arbitrary>], iteration_bounds = array<i64: 2>, scalar_prefetch = 0 : i64, scratch_operands = 0 : i64, tpu.core_type = #tpu.core_type<tc>, window_params = [{transform_indices = @transform_0, window_bounds = array<i64: 1, 8, 192>}, {pipeline_mode = #tpu.pipeline_mode<synchronous>, transform_indices = @transform_1, window_bounds = array<i64: 192, 32>}, {pipeline_mode = #tpu.pipeline_mode<synchronous>, transform_indices = @transform_2, window_bounds = array<i64: 8, 32>}, {pipeline_mode = #tpu.pipeline_mode<synchronous>, transform_indices = @transform_3, window_bounds = array<i64: 2, 32, 512>}, {pipeline_mode = #tpu.pipeline_mode<synchronous>, transform_indices = @transform_4, window_bounds = array<i64: 2, 1, 512>}, {pipeline_mode = #tpu.pipeline_mode<synchronous>, transform_indices = @transform_5, window_bounds = array<i64: 1, 32>}, {pipeline_mode = #tpu.pipeline_mode<synchronous>, transform_indices = @transform_6, window_bounds = array<i64: 1, 32>}, {transform_indices = @transform_7, window_bounds = array<i64: 1, 8, 128>}]} {
    %c0 = arith.constant 0 : index
    %c0_0 = arith.constant 0 : index
    %c0_1 = arith.constant 0 : index
    %0 = vector.load %arg1[%c0, %c0_0, %c0_1] : memref<1x8x192xbf16, #tpu.memory_space<vmem>>, vector<1x8x192xbf16>
    %1 = vector.shape_cast %0 : vector<1x8x192xbf16> to vector<8x192xbf16>
    %c0_2 = arith.constant 0 : index
    %c0_3 = arith.constant 0 : index
    %2 = vector.load %arg2[%c0_2, %c0_3] : memref<192x32xbf16, #tpu.memory_space<vmem>>, vector<192x32xbf16>
    %cst = arith.constant dense<0.000000e+00> : vector<8x32xf32>
    %3 = tpu.matmul %1, %2, %cst {dimension_numbers = #tpu.dot_dimension_numbers<[1], [0], [0], [1], [0, 0, 1, 1], [], []>} : vector<8x192xbf16>, vector<192x32xbf16>, vector<8x32xf32> -> vector<8x32xf32>
    %c0_4 = arith.constant 0 : index
    %c0_5 = arith.constant 0 : index
    %4 = vector.load %arg3[%c0_4, %c0_5] : memref<8x32xf32, #tpu.memory_space<vmem>>, vector<8x32xf32>
    %5 = arith.addf %3, %4 : vector<8x32xf32>
    %6 = tpu.iota {dimensions = array<i32: 1>} : vector<1x8xi32>
    %c5_i32 = arith.constant 5 : i32
    %7 = vector.broadcast %c5_i32 : i32 to vector<1x8xi32>
    %8 = arith.cmpi slt, %6, %7 : vector<1x8xi32>
    %cst_6 = arith.constant 0.000000e+00 : f32
    %cst_7 = arith.constant -1.000000e+30 : f32
    %9 = vector.broadcast %cst_6 : f32 to vector<1x8xf32>
    %10 = vector.broadcast %cst_7 : f32 to vector<1x8xf32>
    %11 = arith.select %8, %9, %10 : vector<1x8xi1>, vector<1x8xf32>
    %c0_8 = arith.constant 0 : index
    %c0_9 = arith.constant 0 : index
    %c0_10 = arith.constant 0 : index
    %12 = vector.load %arg4[%c0_8, %c0_9, %c0_10] : memref<2x32x512xbf16, #tpu.memory_space<vmem>>, vector<1x32x96xbf16>
    %13 = vector.shape_cast %12 : vector<1x32x96xbf16> to vector<32x96xbf16>
    %c0_11 = arith.constant 0 : index
    %c0_12 = arith.constant 0 : index
    %c128 = arith.constant 128 : index
    %14 = vector.load %arg4[%c0_11, %c0_12, %c128] : memref<2x32x512xbf16, #tpu.memory_space<vmem>>, vector<1x32x32xbf16>
    %15 = vector.shape_cast %14 : vector<1x32x32xbf16> to vector<32x32xbf16>
    %c0_13 = arith.constant 0 : index
    %c0_14 = arith.constant 0 : index
    %c256 = arith.constant 256 : index
    %16 = vector.load %arg4[%c0_13, %c0_14, %c256] : memref<2x32x512xbf16, #tpu.memory_space<vmem>>, vector<1x32x128xbf16>
    %17 = vector.shape_cast %16 : vector<1x32x128xbf16> to vector<32x128xbf16>
    %c0_15 = arith.constant 0 : index
    %c0_16 = arith.constant 0 : index
    %c384 = arith.constant 384 : index
    %18 = vector.load %arg4[%c0_15, %c0_16, %c384] : memref<2x32x512xbf16, #tpu.memory_space<vmem>>, vector<1x32x128xbf16>
    %19 = vector.shape_cast %18 : vector<1x32x128xbf16> to vector<32x128xbf16>
    %c0_17 = arith.constant 0 : index
    %c0_18 = arith.constant 0 : index
    %c0_19 = arith.constant 0 : index
    %20 = vector.load %arg5[%c0_17, %c0_18, %c0_19] : memref<2x1x512xf32, #tpu.memory_space<vmem>>, vector<1x1x96xf32>
    %21 = vector.shape_cast %20 : vector<1x1x96xf32> to vector<1x96xf32>
    %c0_20 = arith.constant 0 : index
    %c0_21 = arith.constant 0 : index
    %c128_22 = arith.constant 128 : index
    %22 = vector.load %arg5[%c0_20, %c0_21, %c128_22] : memref<2x1x512xf32, #tpu.memory_space<vmem>>, vector<1x1x32xf32>
    %23 = vector.shape_cast %22 : vector<1x1x32xf32> to vector<1x32xf32>
    %c0_23 = arith.constant 0 : index
    %c0_24 = arith.constant 0 : index
    %c256_25 = arith.constant 256 : index
    %24 = vector.load %arg5[%c0_23, %c0_24, %c256_25] : memref<2x1x512xf32, #tpu.memory_space<vmem>>, vector<1x1x128xf32>
    %25 = vector.shape_cast %24 : vector<1x1x128xf32> to vector<1x128xf32>
    %c0_26 = arith.constant 0 : index
    %c0_27 = arith.constant 0 : index
    %c384_28 = arith.constant 384 : index
    %26 = vector.load %arg5[%c0_26, %c0_27, %c384_28] : memref<2x1x512xf32, #tpu.memory_space<vmem>>, vector<1x1x32xf32>
    %27 = vector.shape_cast %26 : vector<1x1x32xf32> to vector<1x32xf32>
    %cst_29 = arith.constant dense<0.000000e+00> : vector<8xf32>
    %28 = vector.multi_reduction <add>, %5, %cst_29 [1] : vector<8x32xf32> to vector<8xf32>
    %29 = vector.shape_cast %28 : vector<8xf32> to vector<8x1xf32>
    %cst_30 = arith.constant 3.200000e+01 : f32
    %30 = vector.broadcast %cst_30 : f32 to vector<8x1xf32>
    %31 = arith.divf %29, %30 : vector<8x1xf32>
    %32 = vector.broadcast %31 : vector<8x1xf32> to vector<8x32xf32>
    %33 = arith.subf %5, %32 : vector<8x32xf32>
    %34 = arith.mulf %33, %33 : vector<8x32xf32>
    %cst_31 = arith.constant dense<0.000000e+00> : vector<8xf32>
    %35 = vector.multi_reduction <add>, %34, %cst_31 [1] : vector<8x32xf32> to vector<8xf32>
    %36 = vector.shape_cast %35 : vector<8xf32> to vector<8x1xf32>
    %cst_32 = arith.constant 3.200000e+01 : f32
    %37 = vector.broadcast %cst_32 : f32 to vector<8x1xf32>
    %38 = arith.divf %36, %37 : vector<8x1xf32>
    %39 = vector.broadcast %31 : vector<8x1xf32> to vector<8x32xf32>
    %40 = arith.subf %5, %39 : vector<8x32xf32>
    %cst_33 = arith.constant 9.99999997E-7 : f32
    %41 = vector.broadcast %cst_33 : f32 to vector<8x1xf32>
    %42 = arith.addf %38, %41 : vector<8x1xf32>
    %43 = math.rsqrt %42 : vector<8x1xf32>
    %44 = vector.broadcast %43 : vector<8x1xf32> to vector<8x32xf32>
    %45 = arith.mulf %40, %44 : vector<8x32xf32>
    %46 = arith.truncf %45 : vector<8x32xf32> to vector<8x32xbf16>
    %cst_34 = arith.constant dense<0.000000e+00> : vector<8x96xf32>
    %47 = tpu.matmul %46, %13, %cst_34 {dimension_numbers = #tpu.dot_dimension_numbers<[1], [0], [0], [1], [0, 0, 1, 1], [], []>} : vector<8x32xbf16>, vector<32x96xbf16>, vector<8x96xf32> -> vector<8x96xf32>
    %48 = vector.broadcast %21 : vector<1x96xf32> to vector<8x96xf32>
    %49 = arith.addf %47, %48 : vector<8x96xf32>
    %50 = vector.extract_strided_slice %49 {offsets = [0, 0], sizes = [8, 16], strides = [1, 1]} : vector<8x96xf32> to vector<8x16xf32>
    %51 = arith.truncf %50 : vector<8x16xf32> to vector<8x16xbf16>
    %52 = vector.extract_strided_slice %49 {offsets = [0, 32], sizes = [8, 16], strides = [1, 1]} : vector<8x96xf32> to vector<8x16xf32>
    %53 = arith.truncf %52 : vector<8x16xf32> to vector<8x16xbf16>
    %54 = vector.extract_strided_slice %49 {offsets = [0, 64], sizes = [8, 16], strides = [1, 1]} : vector<8x96xf32> to vector<8x16xf32>
    %55 = arith.truncf %54 : vector<8x16xf32> to vector<8x16xbf16>
    %cst_35 = arith.constant dense<0.000000e+00> : vector<8x8xf32>
    %56 = tpu.matmul %51, %53, %cst_35 {dimension_numbers = #tpu.dot_dimension_numbers<[1], [1], [0], [0], [0, 0, 1, 0], [], []>} : vector<8x16xbf16>, vector<8x16xbf16>, vector<8x8xf32> -> vector<8x8xf32>
    %57 = vector.broadcast %11 : vector<1x8xf32> to vector<8x8xf32>
    %58 = arith.addf %56, %57 : vector<8x8xf32>
    %cst_36 = arith.constant dense<0xFF800000> : vector<8xf32>
    %59 = vector.multi_reduction <maximumf>, %58, %cst_36 [1] : vector<8x8xf32> to vector<8xf32>
    %60 = vector.shape_cast %59 : vector<8xf32> to vector<8x1xf32>
    %61 = vector.broadcast %60 : vector<8x1xf32> to vector<8x8xf32>
    %62 = arith.subf %58, %61 : vector<8x8xf32>
    %63 = math.exp %62 : vector<8x8xf32>
    %cst_37 = arith.constant dense<0.000000e+00> : vector<8xf32>
    %64 = vector.multi_reduction <add>, %63, %cst_37 [1] : vector<8x8xf32> to vector<8xf32>
    %65 = vector.shape_cast %64 : vector<8xf32> to vector<8x1xf32>
    %66 = tpu.reciprocal %65 {approx = true} : vector<8x1xf32> -> vector<8x1xf32>
    %67 = vector.broadcast %66 : vector<8x1xf32> to vector<8x8xf32>
    %68 = arith.mulf %63, %67 : vector<8x8xf32>
    %69 = arith.truncf %68 : vector<8x8xf32> to vector<8x8xbf16>
    %cst_38 = arith.constant dense<0.000000e+00> : vector<8x16xf32>
    %70 = tpu.matmul %69, %55, %cst_38 {dimension_numbers = #tpu.dot_dimension_numbers<[1], [0], [0], [1], [0, 0, 1, 1], [], []>} : vector<8x8xbf16>, vector<8x16xbf16>, vector<8x16xf32> -> vector<8x16xf32>
    %71 = vector.extract_strided_slice %49 {offsets = [0, 16], sizes = [8, 16], strides = [1, 1]} : vector<8x96xf32> to vector<8x16xf32>
    %72 = arith.truncf %71 : vector<8x16xf32> to vector<8x16xbf16>
    %73 = vector.extract_strided_slice %49 {offsets = [0, 48], sizes = [8, 16], strides = [1, 1]} : vector<8x96xf32> to vector<8x16xf32>
    %74 = arith.truncf %73 : vector<8x16xf32> to vector<8x16xbf16>
    %75 = vector.extract_strided_slice %49 {offsets = [0, 80], sizes = [8, 16], strides = [1, 1]} : vector<8x96xf32> to vector<8x16xf32>
    %76 = arith.truncf %75 : vector<8x16xf32> to vector<8x16xbf16>
    %cst_39 = arith.constant dense<0.000000e+00> : vector<8x8xf32>
    %77 = tpu.matmul %72, %74, %cst_39 {dimension_numbers = #tpu.dot_dimension_numbers<[1], [1], [0], [0], [0, 0, 1, 0], [], []>} : vector<8x16xbf16>, vector<8x16xbf16>, vector<8x8xf32> -> vector<8x8xf32>
    %78 = vector.broadcast %11 : vector<1x8xf32> to vector<8x8xf32>
    %79 = arith.addf %77, %78 : vector<8x8xf32>
    %cst_40 = arith.constant dense<0xFF800000> : vector<8xf32>
    %80 = vector.multi_reduction <maximumf>, %79, %cst_40 [1] : vector<8x8xf32> to vector<8xf32>
    %81 = vector.shape_cast %80 : vector<8xf32> to vector<8x1xf32>
    %82 = vector.broadcast %81 : vector<8x1xf32> to vector<8x8xf32>
    %83 = arith.subf %79, %82 : vector<8x8xf32>
    %84 = math.exp %83 : vector<8x8xf32>
    %cst_41 = arith.constant dense<0.000000e+00> : vector<8xf32>
    %85 = vector.multi_reduction <add>, %84, %cst_41 [1] : vector<8x8xf32> to vector<8xf32>
    %86 = vector.shape_cast %85 : vector<8xf32> to vector<8x1xf32>
    %87 = tpu.reciprocal %86 {approx = true} : vector<8x1xf32> -> vector<8x1xf32>
    %88 = vector.broadcast %87 : vector<8x1xf32> to vector<8x8xf32>
    %89 = arith.mulf %84, %88 : vector<8x8xf32>
    %90 = arith.truncf %89 : vector<8x8xf32> to vector<8x8xbf16>
    %cst_42 = arith.constant dense<0.000000e+00> : vector<8x16xf32>
    %91 = tpu.matmul %90, %76, %cst_42 {dimension_numbers = #tpu.dot_dimension_numbers<[1], [0], [0], [1], [0, 0, 1, 1], [], []>} : vector<8x8xbf16>, vector<8x16xbf16>, vector<8x16xf32> -> vector<8x16xf32>
    %92 = tpu.concatenate %70, %91 in 1 : vector<8x16xf32>, vector<8x16xf32> -> vector<8x32xf32>
    %93 = arith.truncf %92 : vector<8x32xf32> to vector<8x32xbf16>
    %cst_43 = arith.constant dense<0.000000e+00> : vector<8x32xf32>
    %94 = tpu.matmul %93, %15, %cst_43 {dimension_numbers = #tpu.dot_dimension_numbers<[1], [0], [0], [1], [0, 0, 1, 1], [], []>} : vector<8x32xbf16>, vector<32x32xbf16>, vector<8x32xf32> -> vector<8x32xf32>
    %95 = arith.addf %5, %94 : vector<8x32xf32>
    %96 = vector.broadcast %23 : vector<1x32xf32> to vector<8x32xf32>
    %97 = arith.addf %95, %96 : vector<8x32xf32>
    %cst_44 = arith.constant dense<0.000000e+00> : vector<8xf32>
    %98 = vector.multi_reduction <add>, %97, %cst_44 [1] : vector<8x32xf32> to vector<8xf32>
    %99 = vector.shape_cast %98 : vector<8xf32> to vector<8x1xf32>
    %cst_45 = arith.constant 3.200000e+01 : f32
    %100 = vector.broadcast %cst_45 : f32 to vector<8x1xf32>
    %101 = arith.divf %99, %100 : vector<8x1xf32>
    %102 = vector.broadcast %101 : vector<8x1xf32> to vector<8x32xf32>
    %103 = arith.subf %97, %102 : vector<8x32xf32>
    %104 = arith.mulf %103, %103 : vector<8x32xf32>
    %cst_46 = arith.constant dense<0.000000e+00> : vector<8xf32>
    %105 = vector.multi_reduction <add>, %104, %cst_46 [1] : vector<8x32xf32> to vector<8xf32>
    %106 = vector.shape_cast %105 : vector<8xf32> to vector<8x1xf32>
    %cst_47 = arith.constant 3.200000e+01 : f32
    %107 = vector.broadcast %cst_47 : f32 to vector<8x1xf32>
    %108 = arith.divf %106, %107 : vector<8x1xf32>
    %109 = vector.broadcast %101 : vector<8x1xf32> to vector<8x32xf32>
    %110 = arith.subf %97, %109 : vector<8x32xf32>
    %cst_48 = arith.constant 9.99999997E-7 : f32
    %111 = vector.broadcast %cst_48 : f32 to vector<8x1xf32>
    %112 = arith.addf %108, %111 : vector<8x1xf32>
    %113 = math.rsqrt %112 : vector<8x1xf32>
    %114 = vector.broadcast %113 : vector<8x1xf32> to vector<8x32xf32>
    %115 = arith.mulf %110, %114 : vector<8x32xf32>
    %116 = arith.truncf %115 : vector<8x32xf32> to vector<8x32xbf16>
    %cst_49 = arith.constant dense<0.000000e+00> : vector<8x128xf32>
    %117 = tpu.matmul %116, %17, %cst_49 {dimension_numbers = #tpu.dot_dimension_numbers<[1], [0], [0], [1], [0, 0, 1, 1], [], []>} : vector<8x32xbf16>, vector<32x128xbf16>, vector<8x128xf32> -> vector<8x128xf32>
    %118 = vector.broadcast %25 : vector<1x128xf32> to vector<8x128xf32>
    %119 = arith.addf %117, %118 : vector<8x128xf32>
    %120 = arith.mulf %119, %119 : vector<8x128xf32>
    %121 = arith.mulf %119, %120 : vector<8x128xf32>
    %cst_50 = arith.constant 4.471500e-02 : f32
    %122 = vector.broadcast %cst_50 : f32 to vector<8x128xf32>
    %123 = arith.mulf %122, %121 : vector<8x128xf32>
    %124 = arith.addf %119, %123 : vector<8x128xf32>
    %cst_51 = arith.constant 0.797884583 : f32
    %125 = vector.broadcast %cst_51 : f32 to vector<8x128xf32>
    %126 = arith.mulf %125, %124 : vector<8x128xf32>
    %127 = math.tanh %126 : vector<8x128xf32>
    %cst_52 = arith.constant 1.000000e+00 : f32
    %128 = vector.broadcast %cst_52 : f32 to vector<8x128xf32>
    %129 = arith.addf %128, %127 : vector<8x128xf32>
    %cst_53 = arith.constant 5.000000e-01 : f32
    %130 = vector.broadcast %cst_53 : f32 to vector<8x128xf32>
    %131 = arith.mulf %130, %129 : vector<8x128xf32>
    %132 = arith.mulf %119, %131 : vector<8x128xf32>
    %133 = arith.truncf %132 : vector<8x128xf32> to vector<8x128xbf16>
    %cst_54 = arith.constant dense<0.000000e+00> : vector<8x32xf32>
    %134 = tpu.matmul %133, %19, %cst_54 {dimension_numbers = #tpu.dot_dimension_numbers<[1], [1], [0], [0], [0, 0, 1, 0], [], []>} : vector<8x128xbf16>, vector<32x128xbf16>, vector<8x32xf32> -> vector<8x32xf32>
    %135 = vector.broadcast %27 : vector<1x32xf32> to vector<8x32xf32>
    %136 = arith.addf %134, %135 : vector<8x32xf32>
    %137 = arith.addf %97, %136 : vector<8x32xf32>
    %c1 = arith.constant 1 : index
    %c0_55 = arith.constant 0 : index
    %c0_56 = arith.constant 0 : index
    %138 = vector.load %arg4[%c1, %c0_55, %c0_56] : memref<2x32x512xbf16, #tpu.memory_space<vmem>>, vector<1x32x96xbf16>
    %139 = vector.shape_cast %138 : vector<1x32x96xbf16> to vector<32x96xbf16>
    %c1_57 = arith.constant 1 : index
    %c0_58 = arith.constant 0 : index
    %c128_59 = arith.constant 128 : index
    %140 = vector.load %arg4[%c1_57, %c0_58, %c128_59] : memref<2x32x512xbf16, #tpu.memory_space<vmem>>, vector<1x32x32xbf16>
    %141 = vector.shape_cast %140 : vector<1x32x32xbf16> to vector<32x32xbf16>
    %c1_60 = arith.constant 1 : index
    %c0_61 = arith.constant 0 : index
    %c256_62 = arith.constant 256 : index
    %142 = vector.load %arg4[%c1_60, %c0_61, %c256_62] : memref<2x32x512xbf16, #tpu.memory_space<vmem>>, vector<1x32x128xbf16>
    %143 = vector.shape_cast %142 : vector<1x32x128xbf16> to vector<32x128xbf16>
    %c1_63 = arith.constant 1 : index
    %c0_64 = arith.constant 0 : index
    %c384_65 = arith.constant 384 : index
    %144 = vector.load %arg4[%c1_63, %c0_64, %c384_65] : memref<2x32x512xbf16, #tpu.memory_space<vmem>>, vector<1x32x128xbf16>
    %145 = vector.shape_cast %144 : vector<1x32x128xbf16> to vector<32x128xbf16>
    %c1_66 = arith.constant 1 : index
    %c0_67 = arith.constant 0 : index
    %c0_68 = arith.constant 0 : index
    %146 = vector.load %arg5[%c1_66, %c0_67, %c0_68] : memref<2x1x512xf32, #tpu.memory_space<vmem>>, vector<1x1x96xf32>
    %147 = vector.shape_cast %146 : vector<1x1x96xf32> to vector<1x96xf32>
    %c1_69 = arith.constant 1 : index
    %c0_70 = arith.constant 0 : index
    %c128_71 = arith.constant 128 : index
    %148 = vector.load %arg5[%c1_69, %c0_70, %c128_71] : memref<2x1x512xf32, #tpu.memory_space<vmem>>, vector<1x1x32xf32>
    %149 = vector.shape_cast %148 : vector<1x1x32xf32> to vector<1x32xf32>
    %c1_72 = arith.constant 1 : index
    %c0_73 = arith.constant 0 : index
    %c256_74 = arith.constant 256 : index
    %150 = vector.load %arg5[%c1_72, %c0_73, %c256_74] : memref<2x1x512xf32, #tpu.memory_space<vmem>>, vector<1x1x128xf32>
    %151 = vector.shape_cast %150 : vector<1x1x128xf32> to vector<1x128xf32>
    %c1_75 = arith.constant 1 : index
    %c0_76 = arith.constant 0 : index
    %c384_77 = arith.constant 384 : index
    %152 = vector.load %arg5[%c1_75, %c0_76, %c384_77] : memref<2x1x512xf32, #tpu.memory_space<vmem>>, vector<1x1x32xf32>
    %153 = vector.shape_cast %152 : vector<1x1x32xf32> to vector<1x32xf32>
    %cst_78 = arith.constant dense<0.000000e+00> : vector<8xf32>
    %154 = vector.multi_reduction <add>, %137, %cst_78 [1] : vector<8x32xf32> to vector<8xf32>
    %155 = vector.shape_cast %154 : vector<8xf32> to vector<8x1xf32>
    %cst_79 = arith.constant 3.200000e+01 : f32
    %156 = vector.broadcast %cst_79 : f32 to vector<8x1xf32>
    %157 = arith.divf %155, %156 : vector<8x1xf32>
    %158 = vector.broadcast %157 : vector<8x1xf32> to vector<8x32xf32>
    %159 = arith.subf %137, %158 : vector<8x32xf32>
    %160 = arith.mulf %159, %159 : vector<8x32xf32>
    %cst_80 = arith.constant dense<0.000000e+00> : vector<8xf32>
    %161 = vector.multi_reduction <add>, %160, %cst_80 [1] : vector<8x32xf32> to vector<8xf32>
    %162 = vector.shape_cast %161 : vector<8xf32> to vector<8x1xf32>
    %cst_81 = arith.constant 3.200000e+01 : f32
    %163 = vector.broadcast %cst_81 : f32 to vector<8x1xf32>
    %164 = arith.divf %162, %163 : vector<8x1xf32>
    %165 = vector.broadcast %157 : vector<8x1xf32> to vector<8x32xf32>
    %166 = arith.subf %137, %165 : vector<8x32xf32>
    %cst_82 = arith.constant 9.99999997E-7 : f32
    %167 = vector.broadcast %cst_82 : f32 to vector<8x1xf32>
    %168 = arith.addf %164, %167 : vector<8x1xf32>
    %169 = math.rsqrt %168 : vector<8x1xf32>
    %170 = vector.broadcast %169 : vector<8x1xf32> to vector<8x32xf32>
    %171 = arith.mulf %166, %170 : vector<8x32xf32>
    %172 = arith.truncf %171 : vector<8x32xf32> to vector<8x32xbf16>
    %cst_83 = arith.constant dense<0.000000e+00> : vector<8x96xf32>
    %173 = tpu.matmul %172, %139, %cst_83 {dimension_numbers = #tpu.dot_dimension_numbers<[1], [0], [0], [1], [0, 0, 1, 1], [], []>} : vector<8x32xbf16>, vector<32x96xbf16>, vector<8x96xf32> -> vector<8x96xf32>
    %174 = vector.broadcast %147 : vector<1x96xf32> to vector<8x96xf32>
    %175 = arith.addf %173, %174 : vector<8x96xf32>
    %176 = vector.extract_strided_slice %175 {offsets = [0, 0], sizes = [8, 16], strides = [1, 1]} : vector<8x96xf32> to vector<8x16xf32>
    %177 = arith.truncf %176 : vector<8x16xf32> to vector<8x16xbf16>
    %178 = vector.extract_strided_slice %175 {offsets = [0, 32], sizes = [8, 16], strides = [1, 1]} : vector<8x96xf32> to vector<8x16xf32>
    %179 = arith.truncf %178 : vector<8x16xf32> to vector<8x16xbf16>
    %180 = vector.extract_strided_slice %175 {offsets = [0, 64], sizes = [8, 16], strides = [1, 1]} : vector<8x96xf32> to vector<8x16xf32>
    %181 = arith.truncf %180 : vector<8x16xf32> to vector<8x16xbf16>
    %cst_84 = arith.constant dense<0.000000e+00> : vector<8x8xf32>
    %182 = tpu.matmul %177, %179, %cst_84 {dimension_numbers = #tpu.dot_dimension_numbers<[1], [1], [0], [0], [0, 0, 1, 0], [], []>} : vector<8x16xbf16>, vector<8x16xbf16>, vector<8x8xf32> -> vector<8x8xf32>
    %183 = vector.broadcast %11 : vector<1x8xf32> to vector<8x8xf32>
    %184 = arith.addf %182, %183 : vector<8x8xf32>
    %cst_85 = arith.constant dense<0xFF800000> : vector<8xf32>
    %185 = vector.multi_reduction <maximumf>, %184, %cst_85 [1] : vector<8x8xf32> to vector<8xf32>
    %186 = vector.shape_cast %185 : vector<8xf32> to vector<8x1xf32>
    %187 = vector.broadcast %186 : vector<8x1xf32> to vector<8x8xf32>
    %188 = arith.subf %184, %187 : vector<8x8xf32>
    %189 = math.exp %188 : vector<8x8xf32>
    %cst_86 = arith.constant dense<0.000000e+00> : vector<8xf32>
    %190 = vector.multi_reduction <add>, %189, %cst_86 [1] : vector<8x8xf32> to vector<8xf32>
    %191 = vector.shape_cast %190 : vector<8xf32> to vector<8x1xf32>
    %192 = tpu.reciprocal %191 {approx = true} : vector<8x1xf32> -> vector<8x1xf32>
    %193 = vector.broadcast %192 : vector<8x1xf32> to vector<8x8xf32>
    %194 = arith.mulf %189, %193 : vector<8x8xf32>
    %195 = arith.truncf %194 : vector<8x8xf32> to vector<8x8xbf16>
    %cst_87 = arith.constant dense<0.000000e+00> : vector<8x16xf32>
    %196 = tpu.matmul %195, %181, %cst_87 {dimension_numbers = #tpu.dot_dimension_numbers<[1], [0], [0], [1], [0, 0, 1, 1], [], []>} : vector<8x8xbf16>, vector<8x16xbf16>, vector<8x16xf32> -> vector<8x16xf32>
    %197 = vector.extract_strided_slice %175 {offsets = [0, 16], sizes = [8, 16], strides = [1, 1]} : vector<8x96xf32> to vector<8x16xf32>
    %198 = arith.truncf %197 : vector<8x16xf32> to vector<8x16xbf16>
    %199 = vector.extract_strided_slice %175 {offsets = [0, 48], sizes = [8, 16], strides = [1, 1]} : vector<8x96xf32> to vector<8x16xf32>
    %200 = arith.truncf %199 : vector<8x16xf32> to vector<8x16xbf16>
    %201 = vector.extract_strided_slice %175 {offsets = [0, 80], sizes = [8, 16], strides = [1, 1]} : vector<8x96xf32> to vector<8x16xf32>
    %202 = arith.truncf %201 : vector<8x16xf32> to vector<8x16xbf16>
    %cst_88 = arith.constant dense<0.000000e+00> : vector<8x8xf32>
    %203 = tpu.matmul %198, %200, %cst_88 {dimension_numbers = #tpu.dot_dimension_numbers<[1], [1], [0], [0], [0, 0, 1, 0], [], []>} : vector<8x16xbf16>, vector<8x16xbf16>, vector<8x8xf32> -> vector<8x8xf32>
    %204 = vector.broadcast %11 : vector<1x8xf32> to vector<8x8xf32>
    %205 = arith.addf %203, %204 : vector<8x8xf32>
    %cst_89 = arith.constant dense<0xFF800000> : vector<8xf32>
    %206 = vector.multi_reduction <maximumf>, %205, %cst_89 [1] : vector<8x8xf32> to vector<8xf32>
    %207 = vector.shape_cast %206 : vector<8xf32> to vector<8x1xf32>
    %208 = vector.broadcast %207 : vector<8x1xf32> to vector<8x8xf32>
    %209 = arith.subf %205, %208 : vector<8x8xf32>
    %210 = math.exp %209 : vector<8x8xf32>
    %cst_90 = arith.constant dense<0.000000e+00> : vector<8xf32>
    %211 = vector.multi_reduction <add>, %210, %cst_90 [1] : vector<8x8xf32> to vector<8xf32>
    %212 = vector.shape_cast %211 : vector<8xf32> to vector<8x1xf32>
    %213 = tpu.reciprocal %212 {approx = true} : vector<8x1xf32> -> vector<8x1xf32>
    %214 = vector.broadcast %213 : vector<8x1xf32> to vector<8x8xf32>
    %215 = arith.mulf %210, %214 : vector<8x8xf32>
    %216 = arith.truncf %215 : vector<8x8xf32> to vector<8x8xbf16>
    %cst_91 = arith.constant dense<0.000000e+00> : vector<8x16xf32>
    %217 = tpu.matmul %216, %202, %cst_91 {dimension_numbers = #tpu.dot_dimension_numbers<[1], [0], [0], [1], [0, 0, 1, 1], [], []>} : vector<8x8xbf16>, vector<8x16xbf16>, vector<8x16xf32> -> vector<8x16xf32>
    %218 = tpu.concatenate %196, %217 in 1 : vector<8x16xf32>, vector<8x16xf32> -> vector<8x32xf32>
    %219 = arith.truncf %218 : vector<8x32xf32> to vector<8x32xbf16>
    %cst_92 = arith.constant dense<0.000000e+00> : vector<8x32xf32>
    %220 = tpu.matmul %219, %141, %cst_92 {dimension_numbers = #tpu.dot_dimension_numbers<[1], [0], [0], [1], [0, 0, 1, 1], [], []>} : vector<8x32xbf16>, vector<32x32xbf16>, vector<8x32xf32> -> vector<8x32xf32>
    %221 = arith.addf %137, %220 : vector<8x32xf32>
    %222 = vector.broadcast %149 : vector<1x32xf32> to vector<8x32xf32>
    %223 = arith.addf %221, %222 : vector<8x32xf32>
    %cst_93 = arith.constant dense<0.000000e+00> : vector<8xf32>
    %224 = vector.multi_reduction <add>, %223, %cst_93 [1] : vector<8x32xf32> to vector<8xf32>
    %225 = vector.shape_cast %224 : vector<8xf32> to vector<8x1xf32>
    %cst_94 = arith.constant 3.200000e+01 : f32
    %226 = vector.broadcast %cst_94 : f32 to vector<8x1xf32>
    %227 = arith.divf %225, %226 : vector<8x1xf32>
    %228 = vector.broadcast %227 : vector<8x1xf32> to vector<8x32xf32>
    %229 = arith.subf %223, %228 : vector<8x32xf32>
    %230 = arith.mulf %229, %229 : vector<8x32xf32>
    %cst_95 = arith.constant dense<0.000000e+00> : vector<8xf32>
    %231 = vector.multi_reduction <add>, %230, %cst_95 [1] : vector<8x32xf32> to vector<8xf32>
    %232 = vector.shape_cast %231 : vector<8xf32> to vector<8x1xf32>
    %cst_96 = arith.constant 3.200000e+01 : f32
    %233 = vector.broadcast %cst_96 : f32 to vector<8x1xf32>
    %234 = arith.divf %232, %233 : vector<8x1xf32>
    %235 = vector.broadcast %227 : vector<8x1xf32> to vector<8x32xf32>
    %236 = arith.subf %223, %235 : vector<8x32xf32>
    %cst_97 = arith.constant 9.99999997E-7 : f32
    %237 = vector.broadcast %cst_97 : f32 to vector<8x1xf32>
    %238 = arith.addf %234, %237 : vector<8x1xf32>
    %239 = math.rsqrt %238 : vector<8x1xf32>
    %240 = vector.broadcast %239 : vector<8x1xf32> to vector<8x32xf32>
    %241 = arith.mulf %236, %240 : vector<8x32xf32>
    %242 = arith.truncf %241 : vector<8x32xf32> to vector<8x32xbf16>
    %cst_98 = arith.constant dense<0.000000e+00> : vector<8x128xf32>
    %243 = tpu.matmul %242, %143, %cst_98 {dimension_numbers = #tpu.dot_dimension_numbers<[1], [0], [0], [1], [0, 0, 1, 1], [], []>} : vector<8x32xbf16>, vector<32x128xbf16>, vector<8x128xf32> -> vector<8x128xf32>
    %244 = vector.broadcast %151 : vector<1x128xf32> to vector<8x128xf32>
    %245 = arith.addf %243, %244 : vector<8x128xf32>
    %246 = arith.mulf %245, %245 : vector<8x128xf32>
    %247 = arith.mulf %245, %246 : vector<8x128xf32>
    %cst_99 = arith.constant 4.471500e-02 : f32
    %248 = vector.broadcast %cst_99 : f32 to vector<8x128xf32>
    %249 = arith.mulf %248, %247 : vector<8x128xf32>
    %250 = arith.addf %245, %249 : vector<8x128xf32>
    %cst_100 = arith.constant 0.797884583 : f32
    %251 = vector.broadcast %cst_100 : f32 to vector<8x128xf32>
    %252 = arith.mulf %251, %250 : vector<8x128xf32>
    %253 = math.tanh %252 : vector<8x128xf32>
    %cst_101 = arith.constant 1.000000e+00 : f32
    %254 = vector.broadcast %cst_101 : f32 to vector<8x128xf32>
    %255 = arith.addf %254, %253 : vector<8x128xf32>
    %cst_102 = arith.constant 5.000000e-01 : f32
    %256 = vector.broadcast %cst_102 : f32 to vector<8x128xf32>
    %257 = arith.mulf %256, %255 : vector<8x128xf32>
    %258 = arith.mulf %245, %257 : vector<8x128xf32>
    %259 = arith.truncf %258 : vector<8x128xf32> to vector<8x128xbf16>
    %cst_103 = arith.constant dense<0.000000e+00> : vector<8x32xf32>
    %260 = tpu.matmul %259, %145, %cst_103 {dimension_numbers = #tpu.dot_dimension_numbers<[1], [1], [0], [0], [0, 0, 1, 0], [], []>} : vector<8x128xbf16>, vector<32x128xbf16>, vector<8x32xf32> -> vector<8x32xf32>
    %261 = vector.broadcast %153 : vector<1x32xf32> to vector<8x32xf32>
    %262 = arith.addf %260, %261 : vector<8x32xf32>
    %263 = arith.addf %223, %262 : vector<8x32xf32>
    %cst_104 = arith.constant dense<0.000000e+00> : vector<8xf32>
    %264 = vector.multi_reduction <add>, %263, %cst_104 [1] : vector<8x32xf32> to vector<8xf32>
    %265 = vector.shape_cast %264 : vector<8xf32> to vector<8x1xf32>
    %cst_105 = arith.constant 3.200000e+01 : f32
    %266 = vector.broadcast %cst_105 : f32 to vector<8x1xf32>
    %267 = arith.divf %265, %266 : vector<8x1xf32>
    %268 = vector.broadcast %267 : vector<8x1xf32> to vector<8x32xf32>
    %269 = arith.subf %263, %268 : vector<8x32xf32>
    %270 = arith.mulf %269, %269 : vector<8x32xf32>
    %cst_106 = arith.constant dense<0.000000e+00> : vector<8xf32>
    %271 = vector.multi_reduction <add>, %270, %cst_106 [1] : vector<8x32xf32> to vector<8xf32>
    %272 = vector.shape_cast %271 : vector<8xf32> to vector<8x1xf32>
    %cst_107 = arith.constant 3.200000e+01 : f32
    %273 = vector.broadcast %cst_107 : f32 to vector<8x1xf32>
    %274 = arith.divf %272, %273 : vector<8x1xf32>
    %275 = vector.broadcast %267 : vector<8x1xf32> to vector<8x32xf32>
    %276 = arith.subf %263, %275 : vector<8x32xf32>
    %cst_108 = arith.constant 9.99999997E-7 : f32
    %277 = vector.broadcast %cst_108 : f32 to vector<8x1xf32>
    %278 = arith.addf %274, %277 : vector<8x1xf32>
    %279 = math.rsqrt %278 : vector<8x1xf32>
    %280 = vector.broadcast %279 : vector<8x1xf32> to vector<8x32xf32>
    %281 = arith.mulf %276, %280 : vector<8x32xf32>
    %c0_109 = arith.constant 0 : index
    %c0_110 = arith.constant 0 : index
    %282 = vector.load %arg6[%c0_109, %c0_110] : memref<1x32xf32, #tpu.memory_space<vmem>>, vector<1x32xf32>
    %283 = vector.broadcast %282 : vector<1x32xf32> to vector<8x32xf32>
    %284 = arith.mulf %281, %283 : vector<8x32xf32>
    %c0_111 = arith.constant 0 : index
    %c0_112 = arith.constant 0 : index
    %285 = vector.load %arg7[%c0_111, %c0_112] : memref<1x32xf32, #tpu.memory_space<vmem>>, vector<1x32xf32>
    %286 = vector.broadcast %285 : vector<1x32xf32> to vector<8x32xf32>
    %287 = arith.addf %284, %286 : vector<8x32xf32>
    %cst_113 = arith.constant 0.000000e+00 : f32
    %288 = vector.broadcast %cst_113 : f32 to vector<8x96xf32>
    %289 = tpu.concatenate %287, %288 in 1 : vector<8x32xf32>, vector<8x96xf32> -> vector<8x128xf32>
    %c0_114 = arith.constant 0 : index
    %c0_115 = arith.constant 0 : index
    %c0_116 = arith.constant 0 : index
    %290 = vector.load %arg8[%c0_114, %c0_115, %c0_116] : memref<1x8x128xf32, #tpu.memory_space<vmem>>, vector<1x8x128xf32>
    %291 = vector.shape_cast %290 : vector<1x8x128xf32> to vector<8x128xf32>
    %292 = vector.shape_cast %289 : vector<8x128xf32> to vector<1x8x128xf32>
    tpu.vector_store %arg8[%c0_114, %c0_115, %c0_116], %292 {strides = array<i32>} : memref<1x8x128xf32, #tpu.memory_space<vmem>>, vector<1x8x128xf32>,
    return
  }
  func.func @transform_0(%arg0: i32) -> (i32, i32, i32) {
    %c0_i32 = arith.constant 0 : i32
    %c0_i32_0 = arith.constant 0 : i32
    %c0_i32_1 = arith.constant 0 : i32
    return %arg0, %c0_i32, %c0_i32_0 : i32, i32, i32
  }
  func.func @transform_1(%arg0: i32) -> (i32, i32) {
    %c0_i32 = arith.constant 0 : i32
    %c0_i32_0 = arith.constant 0 : i32
    %c0_i32_1 = arith.constant 0 : i32
    return %c0_i32, %c0_i32_0 : i32, i32
  }
  func.func @transform_2(%arg0: i32) -> (i32, i32) {
    %c0_i32 = arith.constant 0 : i32
    %c0_i32_0 = arith.constant 0 : i32
    %c0_i32_1 = arith.constant 0 : i32
    return %c0_i32, %c0_i32_0 : i32, i32
  }
  func.func @transform_3(%arg0: i32) -> (i32, i32, i32) {
    %c0_i32 = arith.constant 0 : i32
    %c0_i32_0 = arith.constant 0 : i32
    %c0_i32_1 = arith.constant 0 : i32
    %c0_i32_2 = arith.constant 0 : i32
    return %c0_i32, %c0_i32_0, %c0_i32_1 : i32, i32, i32
  }
  func.func @transform_4(%arg0: i32) -> (i32, i32, i32) {
    %c0_i32 = arith.constant 0 : i32
    %c0_i32_0 = arith.constant 0 : i32
    %c0_i32_1 = arith.constant 0 : i32
    %c0_i32_2 = arith.constant 0 : i32
    return %c0_i32, %c0_i32_0, %c0_i32_1 : i32, i32, i32
  }
  func.func @transform_5(%arg0: i32) -> (i32, i32) {
    %c0_i32 = arith.constant 0 : i32
    %c0_i32_0 = arith.constant 0 : i32
    %c0_i32_1 = arith.constant 0 : i32
    return %c0_i32, %c0_i32_0 : i32, i32
  }
  func.func @transform_6(%arg0: i32) -> (i32, i32) {
    %c0_i32 = arith.constant 0 : i32
    %c0_i32_0 = arith.constant 0 : i32
    %c0_i32_1 = arith.constant 0 : i32
    return %c0_i32, %c0_i32_0 : i32, i32
  }
  func.func @transform_7(%arg0: i32) -> (i32, i32, i32) {
    %c0_i32 = arith.constant 0 : i32
    %c0_i32_0 = arith.constant 0 : i32
    %c0_i32_1 = arith.constant 0 : i32
    return %arg0, %c0_i32, %c0_i32_0 : i32, i32, i32
  }
}

</mosaic_0001>

<llo_original>
// kernel: unit_model_encoder_forward.1
$region0: #{unit_model_encoder_forward.1}
  #allocation0 [shape = 'u32[]', space=smem, size = 0x4, offset = 0x4, fixed_abs, tag = 'smem constant byte address 0x4 - core index']
  #allocation1 [shape = 'u32[144,128]{1,0:T(1,128)}', space=vmem, size = 0x12000, scoped, tag = 'internal scratch']
  %s0 = inlined_call_operand.vmem [shape: bf16[2,8,192], index: 0, kind: input, shape index: {}]
  %s1 = inlined_call_operand.vmem [shape: bf16[192,32], index: 1, kind: input, shape index: {}]
  %s2 = inlined_call_operand.vmem [shape: f32[8,32], index: 2, kind: input, shape index: {}]
  %s3 = inlined_call_operand.vmem [shape: bf16[2,32,512], index: 3, kind: input, shape index: {}]
  %s4 = inlined_call_operand.vmem [shape: f32[2,1,512], index: 4, kind: input, shape index: {}]
  %s5 = inlined_call_operand.vmem [shape: f32[1,32], index: 5, kind: input, shape index: {}]
  %s6 = inlined_call_operand.vmem [shape: f32[1,32], index: 6, kind: input, shape index: {}]
  %s7 = inlined_call_operand.vmem [shape: f32[2,8,128], index: 7, kind: output, shape index: {}]
  %s8 = sld [smem:[#allocation0]]
  $region61: #{unit_model_encoder_forward.1} parent=0
    _
  %s10 = ssub.s32 1, %s8
  %s11 = scalar_select 0, %s10, %s8
  loop: start=0, step=1, limit=4
  $region2: #{unit_model_encoder_forward.1} parent=0 // loop_pre_header
    _
  $region3: #{unit_model_encoder_forward.1} parent=0 // loop_header
    %s13 = sphi 0, %s17
    %p14 = scmp.ge.s32.totalorder %s13, 4
    %s23 = sphi 0, %s25
    %s26 = sphi 0, %s23
    %s27 = sphi 0, %s26
    %s43 = sphi 0, %s27
    %s47 = sphi 0, %s47
    %s49 = sphi 0, %s47
    %s50 = sphi 0, %s49
    %s64 = sphi 0, %s50
    %s68 = sphi 0, %s68
    %s70 = sphi 0, %s68
    %s71 = sphi 0, %s70
    %s85 = sphi 0, %s71
    %s89 = sphi 0, %s89
    %s91 = sphi 0, %s89
    %s92 = sphi 0, %s91
    %s106 = sphi 0, %s92
    %s110 = sphi 0, %s110
    %s112 = sphi 0, %s110
    %s113 = sphi 0, %s112
    %s127 = sphi 0, %s113
    %s131 = sphi 0, %s131
    %s133 = sphi 0, %s131
    %s134 = sphi 0, %s133
    %s148 = sphi 0, %s134
    %s152 = sphi 0, %s152
    %s154 = sphi 0, %s152
    %s155 = sphi 0, %s154
    %s169 = sphi 0, %s155
    %s175 = sphi 0, %s177
    %s178 = sphi 0, %s175
    %s179 = sphi 0, %s178
    %s195 = sphi 0, %s179
  $region4: #{unit_model_encoder_forward.1} parent=0 // loop_header_branch
    %16 = sbr.rel (%p14) target = $region8
  $region5: #{unit_model_encoder_forward.1} parent=0 // loop_body
    %s18 = ssub.s32 %s13, 1
    %s19 = ssub.s32 %s13, 2
    %s20 = sadd.s32 %s13, 1
    %s21 = ssub.s32 %s13, %s20
    %p22 = scmp.eq.s32.totalorder %s21, 0
    %s24 = sadd.s32 %s23, 1
    %s25 = scalar_select %p22, %s23, %s24
    %p28 = pneg %p22
    %p29 = scmp.eq.s32.totalorder %s13, 1
    %p30 = por %p28, %p29
    %p31 = scmp.ne.s32.totalorder %s23, %s26
    %p32 = scmp.eq.s32.totalorder %s13, 0
    %p33 = por %p31, %p32
    %p34 = scmp.ne.s32.totalorder %s23, %s26
    %p35 = scmp.eq.s32.totalorder %s18, 1
    %p36 = por %p34, %p35
    %p37 = scmp.ne.s32.totalorder %s26, %s27
    %p38 = scmp.eq.s32.totalorder %s18, 0
    %p39 = por %p37, %p38
    %p40 = scmp.ne.s32.totalorder %s26, %s27
    %p41 = scmp.eq.s32.totalorder %s19, 1
    %p42 = por %p40, %p41
    %p44 = scmp.ne.s32.totalorder %s27, %s43
    %p45 = scmp.eq.s32.totalorder %s19, 0
    %p46 = por %p44, %p45
    %s48 = sadd.s32 %s47, 1
    %p51 = scmp.eq.s32.totalorder %s13, 1
    %p52 = scmp.ne.s32.totalorder %s47, %s49
    %p53 = scmp.eq.s32.totalorder %s13, 0
    %p54 = por %p52, %p53
    %p55 = scmp.ne.s32.totalorder %s47, %s49
    %p56 = scmp.eq.s32.totalorder %s18, 1
    %p57 = por %p55, %p56
    %p58 = scmp.ne.s32.totalorder %s49, %s50
    %p59 = scmp.eq.s32.totalorder %s18, 0
    %p60 = por %p58, %p59
    %p61 = scmp.ne.s32.totalorder %s49, %s50
    %p62 = scmp.eq.s32.totalorder %s19, 1
    %p63 = por %p61, %p62
    %p65 = scmp.ne.s32.totalorder %s50, %s64
    %p66 = scmp.eq.s32.totalorder %s19, 0
    %p67 = por %p65, %p66
    %s69 = sadd.s32 %s68, 1
    %p72 = scmp.eq.s32.totalorder %s13, 1
    %p73 = scmp.ne.s32.totalorder %s68, %s70
    %p74 = scmp.eq.s32.totalorder %s13, 0
    %p75 = por %p73, %p74
    %p76 = scmp.ne.s32.totalorder %s68, %s70
    %p77 = scmp.eq.s32.totalorder %s18, 1
    %p78 = por %p76, %p77
    %p79 = scmp.ne.s32.totalorder %s70, %s71
    %p80 = scmp.eq.s32.totalorder %s18, 0
    %p81 = por %p79, %p80
    %p82 = scmp.ne.s32.totalorder %s70, %s71
    %p83 = scmp.eq.s32.totalorder %s19, 1
    %p84 = por %p82, %p83
    %p86 = scmp.ne.s32.totalorder %s71, %s85
    %p87 = scmp.eq.s32.totalorder %s19, 0
    %p88 = por %p86, %p87
    %s90 = sadd.s32 %s89, 1
    %p93 = scmp.eq.s32.totalorder %s13, 1
    %p94 = scmp.ne.s32.totalorder %s89, %s91
    %p95 = scmp.eq.s32.totalorder %s13, 0
    %p96 = por %p94, %p95
    %p97 = scmp.ne.s32.totalorder %s89, %s91
    %p98 = scmp.eq.s32.totalorder %s18, 1
    %p99 = por %p97, %p98
    %p100 = scmp.ne.s32.totalorder %s91, %s92
    %p101 = scmp.eq.s32.totalorder %s18, 0
    %p102 = por %p100, %p101
    %p103 = scmp.ne.s32.totalorder %s91, %s92
    %p104 = scmp.eq.s32.totalorder %s19, 1
    %p105 = por %p103, %p104
    %p107 = scmp.ne.s32.totalorder %s92, %s106
    %p108 = scmp.eq.s32.totalorder %s19, 0
    %p109 = por %p107, %p108
    %s111 = sadd.s32 %s110, 1
    %p114 = scmp.eq.s32.totalorder %s13, 1
    %p115 = scmp.ne.s32.totalorder %s110, %s112
    %p116 = scmp.eq.s32.totalorder %s13, 0
    %p117 = por %p115, %p116
    %p118 = scmp.ne.s32.totalorder %s110, %s112
    %p119 = scmp.eq.s32.totalorder %s18, 1
    %p120 = por %p118, %p119
    %p121 = scmp.ne.s32.totalorder %s112, %s113
    %p122 = scmp.eq.s32.totalorder %s18, 0
    %p123 = por %p121, %p122
    %p124 = scmp.ne.s32.totalorder %s112, %s113
    %p125 = scmp.eq.s32.totalorder %s19, 1
    %p126 = por %p124, %p125
    %p128 = scmp.ne.s32.totalorder %s113, %s127
    %p129 = scmp.eq.s32.totalorder %s19, 0
    %p130 = por %p128, %p129
    %s132 = sadd.s32 %s131, 1
    %p135 = scmp.eq.s32.totalorder %s13, 1
    %p136 = scmp.ne.s32.totalorder %s131, %s133
    %p137 = scmp.eq.s32.totalorder %s13, 0
    %p138 = por %p136, %p137
    %p139 = scmp.ne.s32.totalorder %s131, %s133
    %p140 = scmp.eq.s32.totalorder %s18, 1
    %p141 = por %p139, %p140
    %p142 = scmp.ne.s32.totalorder %s133, %s134
    %p143 = scmp.eq.s32.totalorder %s18, 0
    %p144 = por %p142, %p143
    %p145 = scmp.ne.s32.totalorder %s133, %s134
    %p146 = scmp.eq.s32.totalorder %s19, 1
    %p147 = por %p145, %p146
    %p149 = scmp.ne.s32.totalorder %s134, %s148
    %p150 = scmp.eq.s32.totalorder %s19, 0
    %p151 = por %p149, %p150
    %s153 = sadd.s32 %s152, 1
    %p156 = scmp.eq.s32.totalorder %s13, 1
    %p157 = scmp.ne.s32.totalorder %s152, %s154
    %p158 = scmp.eq.s32.totalorder %s13, 0
    %p159 = por %p157, %p158
    %p160 = scmp.ne.s32.totalorder %s152, %s154
    %p161 = scmp.eq.s32.totalorder %s18, 1
    %p162 = por %p160, %p161
    %p163 = scmp.ne.s32.totalorder %s154, %s155
    %p164 = scmp.eq.s32.totalorder %s18, 0
    %p165 = por %p163, %p164
    %p166 = scmp.ne.s32.totalorder %s154, %s155
    %p167 = scmp.eq.s32.totalorder %s19, 1
    %p168 = por %p166, %p167
    %p170 = scmp.ne.s32.totalorder %s155, %s169
    %p171 = scmp.eq.s32.totalorder %s19, 0
    %p172 = por %p170, %p171
    %s173 = ssub.s32 %s13, %s20
    %p174 = scmp.eq.s32.totalorder %s173, 0
    %s176 = sadd.s32 %s175, 1
    %s177 = scalar_select %p174, %s175, %s176
    %p180 = pneg %p174
    %p181 = scmp.eq.s32.totalorder %s13, 1
    %p182 = por %p180, %p181
    %p183 = scmp.ne.s32.totalorder %s175, %s178
    %p184 = scmp.eq.s32.totalorder %s13, 0
    %p185 = por %p183, %p184
    %p186 = scmp.ne.s32.totalorder %s175, %s178
    %p187 = scmp.eq.s32.totalorder %s18, 1
    %p188 = por %p186, %p187
    %p189 = scmp.ne.s32.totalorder %s178, %s179
    %p190 = scmp.eq.s32.totalorder %s18, 0
    %p191 = por %p189, %p190
    %p192 = scmp.ne.s32.totalorder %s178, %s179
    %p193 = scmp.eq.s32.totalorder %s19, 1
    %p194 = por %p192, %p193
    %p196 = scmp.ne.s32.totalorder %s179, %s195
    %p197 = scmp.eq.s32.totalorder %s19, 0
    %p198 = por %p196, %p197
    %p199 = scmp.le.s32.totalorder 1, %s13
    %p200 = scmp.lt.s32.totalorder %s13, 3
    %p201 = pnand %p199, %p200
    %p202 = pneg %p201
    // Predicated region
    $region9: #{unit_model_encoder_forward.1} parent=5 // pred_check
      _
    $region10: #{unit_model_encoder_forward.1} parent=5 // pred_check_branch
      %204 = sbr.rel (%p201) target = $region12
    $region11: #{unit_model_encoder_forward.1} parent=5 // pred_region
      %s205 = ssub.s32 %s13, 1
      // Predicated region
      $region13: #{unit_model_encoder_forward.1} parent=11 // pred_check
        %p206 = pneg %p60
      $region14: #{unit_model_encoder_forward.1} parent=11 // pred_check_branch
        %208 = sbr.rel (%p206) target = $region16
      $region15: #{unit_model_encoder_forward.1} parent=11 // pred_region
        _
      $region16: #{unit_model_encoder_forward.1} parent=11 // pred_fallthru
        _
      // Predicated region
      $region17: #{unit_model_encoder_forward.1} parent=11 // pred_check
        %p209 = pneg %p81
      $region18: #{unit_model_encoder_forward.1} parent=11 // pred_check_branch
        %211 = sbr.rel (%p209) target = $region20
      $region19: #{unit_model_encoder_forward.1} parent=11 // pred_region
        _
      $region20: #{unit_model_encoder_forward.1} parent=11 // pred_fallthru
        _
      // Predicated region
      $region21: #{unit_model_encoder_forward.1} parent=11 // pred_check
        %p212 = pneg %p102
      $region22: #{unit_model_encoder_forward.1} parent=11 // pred_check_branch
        %214 = sbr.rel (%p212) target = $region24
      $region23: #{unit_model_encoder_forward.1} parent=11 // pred_region
        _
      $region24: #{unit_model_encoder_forward.1} parent=11 // pred_fallthru
        _
      // Predicated region
      $region25: #{unit_model_encoder_forward.1} parent=11 // pred_check
        %p215 = pneg %p123
      $region26: #{unit_model_encoder_forward.1} parent=11 // pred_check_branch
        %217 = sbr.rel (%p215) target = $region28
      $region27: #{unit_model_encoder_forward.1} parent=11 // pred_region
        _
      $region28: #{unit_model_encoder_forward.1} parent=11 // pred_fallthru
        _
      // Predicated region
      $region29: #{unit_model_encoder_forward.1} parent=11 // pred_check
        %p218 = pneg %p144
      $region30: #{unit_model_encoder_forward.1} parent=11 // pred_check_branch
        %220 = sbr.rel (%p218) target = $region32
      $region31: #{unit_model_encoder_forward.1} parent=11 // pred_region
        _
      $region32: #{unit_model_encoder_forward.1} parent=11 // pred_fallthru
        _
      // Predicated region
      $region33: #{unit_model_encoder_forward.1} parent=11 // pred_check
        %p221 = pneg %p165
      $region34: #{unit_model_encoder_forward.1} parent=11 // pred_check_branch
        %223 = sbr.rel (%p221) target = $region36
      $region35: #{unit_model_encoder_forward.1} parent=11 // pred_region
        _
      $region36: #{unit_model_encoder_forward.1} parent=11 // pred_fallthru
        _
    $region12: #{unit_model_encoder_forward.1} parent=5 // pred_fallthru
      _
    %p224 = scmp.lt.s32.totalorder %s13, 2
    // Predicated region
    $region37: #{unit_model_encoder_forward.1} parent=5 // pred_check
      %p225 = pneg %p224
    $region38: #{unit_model_encoder_forward.1} parent=5 // pred_check_branch
      %227 = sbr.rel (%p225) target = $region40
    $region39: #{unit_model_encoder_forward.1} parent=5 // pred_region
      // Predicated region
      $region41: #{unit_model_encoder_forward.1} parent=39 // pred_check
        %p228 = pneg %p33
      $region42: #{unit_model_encoder_forward.1} parent=39 // pred_check_branch
        %230 = sbr.rel (%p228) target = $region44
      $region43: #{unit_model_encoder_forward.1} parent=39 // pred_region
        %p231 = scmp.lt.s32.totalorder %s13, 1
        %s232 = scalar_select %p231, %s13, 1
        %s233 = smul.addr %s232, 2
        %s234 = smul.addr %s233, 4
        %s235 = scalar_lea.vmem %s0, %s234
      $region44: #{unit_model_encoder_forward.1} parent=39 // pred_fallthru
        _
    $region40: #{unit_model_encoder_forward.1} parent=5 // pred_fallthru
      _
    %p236 = scmp.le.s32.totalorder 1, %s13
    %p237 = scmp.lt.s32.totalorder %s13, 3
    %p238 = pnand %p236, %p237
    %p239 = pneg %p238
    // Predicated region
    $region45: #{unit_model_encoder_forward.1} parent=5 // pred_check
      _
    $region46: #{unit_model_encoder_forward.1} parent=5 // pred_check_branch
      %241 = sbr.rel (%p238) target = $region48
    $region47: #{unit_model_encoder_forward.1} parent=5 // pred_region
      %s242 = ssub.s32 %s13, 1
      %p243 = scmp.lt.s32.totalorder %s18, 1
      %s244 = scalar_select %p243, %s18, 1
      %s245 = smul.addr %s244, 2
      %s246 = smul.addr %s245, 4
      %s247 = scalar_lea.vmem %s0, %s246
      %p248 = pneg %p39
      %p249 = pneg %p36
      %p250 = pneg %p60
      %p251 = pneg %p57
      %p252 = pneg %p81
      %p253 = pneg %p78
      %p254 = pneg %p102
      %p255 = pneg %p99
      %p256 = pneg %p123
      %p257 = pneg %p120
      %p258 = pneg %p144
      %p259 = pneg %p141
      %p260 = pneg %p165
      %p261 = pneg %p162
      %p262 = pneg %p191
      %p263 = pneg %p188
      %p264 = scmp.lt.s32.totalorder %s18, 1
      %s265 = scalar_select %p264, %s18, 1
      %s266 = smul.addr %s265, 8
      %s267 = scalar_lea.vmem %s7, %s266
      %p268 = scmp.lt.s32.totalorder %s18, 1
      %s269 = scalar_select %p268, %s18, 1
      %s270 = smul.addr %s269, 2
      %s271 = smul.addr %s270, 4
      %s272 = scalar_lea.vmem %s0, %s271
      %p273 = scmp.lt.s32.totalorder %s18, 1
      %s274 = scalar_select %p273, %s18, 1
      %s275 = smul.addr %s274, 8
      %s276 = scalar_lea.vmem %s7, %s275
      %v278 = vld [vmem:[%s272] sm:$0xff]
      %v279 = vld [vmem:[%s1] sm:$0xf]
      %v280 = vld [vmem:[%s1 + $0x4] sm:$0xf]
      %v281 = vld [vmem:[%s1 + $0x8] sm:$0xf]
      %v282 = vld [vmem:[%s1 + $0xc] sm:$0xf]
      %v283 = vld [vmem:[%s1 + $0x10] sm:$0xf]
      %v284 = vld [vmem:[%s1 + $0x14] sm:$0xf]
      %v285 = vld [vmem:[%s1 + $0x18] sm:$0xf]
      %v286 = vld [vmem:[%s1 + $0x1c] sm:$0xf]
      %v287 = vld [vmem:[%s1 + $0x20] sm:$0xf]
      %v288 = vld [vmem:[%s1 + $0x24] sm:$0xf]
      %v289 = vld [vmem:[%s1 + $0x28] sm:$0xf]
      %v290 = vld [vmem:[%s1 + $0x2c] sm:$0xf]
      %v291 = vld [vmem:[%s1 + $0x30] sm:$0xf]
      %v292 = vld [vmem:[%s1 + $0x34] sm:$0xf]
      %v293 = vld [vmem:[%s1 + $0x38] sm:$0xf]
      %v294 = vld [vmem:[%s1 + $0x3c] sm:$0xf]
      %v295 = vld [vmem:[%s1 + $0x40] sm:$0xf]
      %v296 = vld [vmem:[%s1 + $0x44] sm:$0xf]
      %v297 = vld [vmem:[%s1 + $0x48] sm:$0xf]
      %v298 = vld [vmem:[%s1 + $0x4c] sm:$0xf]
      %v299 = vld [vmem:[%s1 + $0x50] sm:$0xf]
      %v300 = vld [vmem:[%s1 + $0x54] sm:$0xf]
      %v301 = vld [vmem:[%s1 + $0x58] sm:$0xf]
      %v302 = vld [vmem:[%s1 + $0x5c] sm:$0xf]
      %v303 = vld [vmem:[%s2] sm:$0xff]
      %v305 = vunpack.c.l.b16 %v278
      %v306 = vunpack.c.h.b16 %v278
      %v307 = vpack.c.b16 %v305, %v305
      %v308 = vpack.c.b16 %v306, %v306
      %v334 = vunpack.c.l.b16 %v279
      %v335 = vunpack.c.l.b16 %v280
      %v336 = vunpack.c.l.b16 %v281
      %v337 = vunpack.c.l.b16 %v282
      %v338 = vunpack.c.l.b16 %v283
      %v339 = vunpack.c.l.b16 %v284
      %v340 = vunpack.c.l.b16 %v285
      %v341 = vunpack.c.l.b16 %v286
      %v342 = vunpack.c.l.b16 %v287
      %v343 = vunpack.c.l.b16 %v288
      %v344 = vunpack.c.l.b16 %v289
      %v345 = vunpack.c.l.b16 %v290
      %v346 = vunpack.c.l.b16 %v291
      %v347 = vunpack.c.l.b16 %v292
      %v348 = vunpack.c.l.b16 %v293
      %v349 = vunpack.c.l.b16 %v294
      %v350 = vunpack.c.l.b16 %v295
      %v351 = vunpack.c.l.b16 %v296
      %v352 = vunpack.c.l.b16 %v297
      %v353 = vunpack.c.l.b16 %v298
      %v354 = vunpack.c.l.b16 %v299
      %v355 = vunpack.c.l.b16 %v300
      %v356 = vunpack.c.l.b16 %v301
      %v357 = vunpack.c.l.b16 %v302
      %v358 = vpack.c.b16 %v335, %v334
      %v359 = vpack.c.b16 %v337, %v336
      %v360 = vpack.c.b16 %v339, %v338
      %v361 = vpack.c.b16 %v341, %v340
      %v362 = vpack.c.b16 %v343, %v342
      %v363 = vpack.c.b16 %v345, %v344
      %v364 = vpack.c.b16 %v347, %v346
      %v365 = vpack.c.b16 %v349, %v348
      %v366 = vpack.c.b16 %v351, %v350
      %v367 = vpack.c.b16 %v353, %v352
      %v368 = vpack.c.b16 %v355, %v354
      %v369 = vpack.c.b16 %v357, %v356
      %vm382 = vcmask 523264
      %v384 = vsel %vm382, %v308, 0
      %386 = vmatprep.subr.bf16.mxu0 0
      %387 = vmatpush1.bf16.msra.mxu0 %v358
      %388 = vmatprep.subr.bf16.mxu0 0
      %389 = vmatpush1.bf16.msra.mxu0 %v359
      %390 = vmatprep.subr.bf16.mxu0 0
      %391 = vmatpush1.bf16.msra.mxu0 %v360
      %392 = vmatprep.subr.bf16.mxu0 0
      %393 = vmatpush1.bf16.msra.mxu0 %v361
      %394 = vmatprep.subr.bf16.mxu0 0
      %395 = vmatpush1.bf16.msra.mxu0 %v362
      %396 = vmatprep.subr.bf16.mxu0 0
      %397 = vmatpush1.bf16.msra.mxu0 %v363
      %398 = vmatprep.subr.bf16.mxu0 0
      %399 = vmatpush1.bf16.msra.mxu0 %v364
      %400 = vmatprep.subr.bf16.mxu0 0
      %401 = vmatpush1.bf16.msra.mxu0 %v365
      %402 = vmatprep.subr.bf16.mxu0 0
      %403 = vmatpush1.bf16.msra.mxu0 %v366
      %404 = vmatprep.subr.bf16.mxu0 0
      %405 = vmatpush1.bf16.msra.mxu0 %v367
      %406 = vmatprep.subr.bf16.mxu0 0
      %407 = vmatpush1.bf16.msra.mxu0 %v368
      %408 = vmatprep.subr.bf16.mxu0 0
      %409 = vmatpush1.bf16.msra.mxu0 %v369
      %410 = vmatprep.subr.bf16.mxu0 0
      %411 = vmatpush1.bf16.msra.mxu0 0
      %412 = vmatprep.subr.bf16.mxu0 0
      %413 = vmatpush1.bf16.msra.mxu0 0
      %414 = vmatprep.subr.bf16.mxu0 0
      %415 = vmatpush1.bf16.msra.mxu0 0
      %416 = vmatprep.subr.bf16.mxu0 0
      %417 = vmatpush1.bf16.msra.mxu0 0
      %418 = vmatprep.mubr.bf16.mxu0 %v384
      %419 = vmatmul.mubr.bf16.gmra.mrb[0].mxu0 %v307
      %v420 = vpop.f32.mrb[0].mxu0
      %v421 = vadd.f32 %v303, %v420
      %v422 = vpop.f32.mrb[0].mxu0
      %v423 = vpop.f32.mrb[0].mxu0
      %v424 = vpop.f32.mrb[0].mxu0
      %425 = vdwg.mxu0
      %v426 = vlaneseq
      %v427 = vand.u32 %v426, 127
      %vm428 = vcmp.lt.s32.totalorder %v427, 5
      %v429 = vsel %vm428, 0.0, -1e+30
      %v430 = vld [vmem:[%s3] sm:$0xf]
      %v431 = vld [vmem:[%s3 + $0x10] sm:$0xf]
      %v432 = vld [vmem:[%s3 + $0x20] sm:$0xf]
      %v433 = vld [vmem:[%s3 + $0x30] sm:$0xf]
      %v434 = vld [vmem:[%s3 + $0x4] sm:$0xf]
      %v435 = vld [vmem:[%s3 + $0x14] sm:$0xf]
      %v436 = vld [vmem:[%s3 + $0x24] sm:$0xf]
      %v437 = vld [vmem:[%s3 + $0x34] sm:$0xf]
      %v438 = vld [vmem:[%s3 + $0x8] sm:$0xf]
      %v439 = vld [vmem:[%s3 + $0x18] sm:$0xf]
      %v440 = vld [vmem:[%s3 + $0x28] sm:$0xf]
      %v441 = vld [vmem:[%s3 + $0x38] sm:$0xf]
      %v442 = vld [vmem:[%s3 + $0xc] sm:$0xf]
      %v443 = vld [vmem:[%s3 + $0x1c] sm:$0xf]
      %v444 = vld [vmem:[%s3 + $0x2c] sm:$0xf]
      %v445 = vld [vmem:[%s3 + $0x3c] sm:$0xf]
      %v446 = vld [vmem:[%s4] sm:$0x1]
      %v447 = vld [vmem:[%s4 + $0x1] sm:$0x1]
      %v448 = vld [vmem:[%s4 + $0x2] sm:$0x1]
      %v449 = vld [vmem:[%s4 + $0x3] sm:$0x1]
      %vm450 = vcmask 261120
      %v451 = vsel %vm450, %v421, 0.0
      %452 = vadd.xlane.f32.xlu0 %v451
      %v453 = vpop.xlane.xlu0 %452
      %v454 = vrcp.pop 32.0
      %v455 = vmul.f32 %v453, %v454
      %v456 = vsub.f32 %v421, %v455
      %v457 = vmul.f32 %v456, %v456
      %v458 = vsel %vm450, %v457, 0.0
      %459 = vadd.xlane.f32.xlu0 %v458
      %v460 = vpop.xlane.xlu0 %459
      %v461 = vmul.f32 %v460, %v454
      %v462 = vadd.f32 %v461, 1e-06
      %v463 = vrsqrt.pop %v462
      %v464 = vmul.f32 %v456, %v463
      %v465 = vpack.c.bf16 %v464, %v464
      %v467 = vlaneseq
      %v468 = vshrl.u32 %v467, 7
      %v469 = vsub.s32 0, %v468
      %v470 = vrot.slane %v446, %v469
      %v476 = vunpack.c.l.b16 %v430
      %v477 = vunpack.c.l.b16 %v431
      %v478 = vunpack.c.l.b16 %v432
      %v479 = vunpack.c.l.b16 %v433
      %v480 = vpack.c.b16 %v477, %v476
      %v481 = vpack.c.b16 %v479, %v478
      %v485 = vsel %vm450, %v465, 0
      %487 = vmatprep.subr.bf16.mxu0 0
      %488 = vmatpush1.bf16.msra.mxu0 %v480
      %489 = vmatprep.subr.bf16.mxu0 0
      %490 = vmatpush1.bf16.msra.mxu0 %v481
      %491 = vmatprep.subr.bf16.mxu0 0
      %492 = vmatpush1.bf16.msra.mxu0 0
      %493 = vmatprep.subr.bf16.mxu0 0
      %494 = vmatpush1.bf16.msra.mxu0 0
      %495 = vmatprep.subr.bf16.mxu0 0
      %496 = vmatpush1.bf16.msra.mxu0 0
      %497 = vmatprep.subr.bf16.mxu0 0
      %498 = vmatpush1.bf16.msra.mxu0 0
      %499 = vmatprep.subr.bf16.mxu0 0
      %500 = vmatpush1.bf16.msra.mxu0 0
      %501 = vmatprep.subr.bf16.mxu0 0
      %502 = vmatpush1.bf16.msra.mxu0 0
      %503 = vmatprep.subr.bf16.mxu0 0
      %504 = vmatpush1.bf16.msra.mxu0 0
      %505 = vmatprep.subr.bf16.mxu0 0
      %506 = vmatpush1.bf16.msra.mxu0 0
      %507 = vmatprep.subr.bf16.mxu0 0
      %508 = vmatpush1.bf16.msra.mxu0 0
      %509 = vmatprep.subr.bf16.mxu0 0
      %510 = vmatpush1.bf16.msra.mxu0 0
      %511 = vmatprep.subr.bf16.mxu0 0
      %512 = vmatpush1.bf16.msra.mxu0 0
      %513 = vmatprep.subr.bf16.mxu0 0
      %514 = vmatpush1.bf16.msra.mxu0 0
      %515 = vmatprep.subr.bf16.mxu0 0
      %516 = vmatpush1.bf16.msra.mxu0 0
      %517 = vmatprep.subr.bf16.mxu0 0
      %518 = vmatpush1.bf16.msra.mxu0 0
      %519 = vmatprep.mubr.bf16.mxu0 0
      %520 = vmatmul.mubr.bf16.gmra.mrb[0].mxu0 %v485
      %v521 = vpop.f32.mrb[0].mxu0
      %v522 = vadd.f32 %v470, %v521
      %v523 = vpop.f32.mrb[0].mxu0
      %v524 = vpop.f32.mrb[0].mxu0
      %v525 = vpop.f32.mrb[0].mxu0
      %526 = vdwg.mxu0
      %v527 = vpack.c.bf16 %v522, %v522
      %529 = vrot.lane.b32.xlu0 %v527, 96
      %v530 = vpop.permute.xlu0 %529
      %vm531 = vcmask 130048
      %v533 = vsel %vm531, %v527, 0
      %v536 = vsel %vm531, %v530, 0
      %538 = vmatprep.subr.bf16.mxu0 0
      %539 = vmatpush1.bf16.xpose.msra.mxu0 %v536
      %540 = vmatprep.subr.bf16.mxu0 0
      %541 = vmatpush1.bf16.xpose.msra.mxu0 0
      %542 = vmatprep.subr.bf16.mxu0 0
      %543 = vmatpush1.bf16.xpose.msra.mxu0 0
      %544 = vmatprep.subr.bf16.mxu0 0
      %545 = vmatpush1.bf16.xpose.msra.mxu0 0
      %546 = vmatprep.subr.bf16.mxu0 0
      %547 = vmatpush1.bf16.xpose.msra.mxu0 0
      %548 = vmatprep.subr.bf16.mxu0 0
      %549 = vmatpush1.bf16.xpose.msra.mxu0 0
      %550 = vmatprep.subr.bf16.mxu0 0
      %551 = vmatpush1.bf16.xpose.msra.mxu0 0
      %552 = vmatprep.subr.bf16.mxu0 0
      %553 = vmatpush1.bf16.xpose.msra.mxu0 0
      %554 = vmatprep.subr.bf16.mxu0 0
      %555 = vmatpush1.bf16.xpose.msra.mxu0 0
      %556 = vmatprep.subr.bf16.mxu0 0
      %557 = vmatpush1.bf16.xpose.msra.mxu0 0
      %558 = vmatprep.subr.bf16.mxu0 0
      %559 = vmatpush1.bf16.xpose.msra.mxu0 0
      %560 = vmatprep.subr.bf16.mxu0 0
      %561 = vmatpush1.bf16.xpose.msra.mxu0 0
      %562 = vmatprep.subr.bf16.mxu0 0
      %563 = vmatpush1.bf16.xpose.msra.mxu0 0
      %564 = vmatprep.subr.bf16.mxu0 0
      %565 = vmatpush1.bf16.xpose.msra.mxu0 0
      %566 = vmatprep.subr.bf16.mxu0 0
      %567 = vmatpush1.bf16.xpose.msra.mxu0 0
      %568 = vmatprep.subr.bf16.mxu0 0
      %569 = vmatpush1.bf16.xpose.msra.mxu0 0
      %570 = vmatprep.mubr.bf16.mxu0 0
      %571 = vmatmul.mubr.bf16.gmra.mrb[0].mxu0 %v533
      %v572 = vpop.f32.mrb[0].mxu0
      %v573 = vadd.f32 %v429, %v572
      %v574 = vpop.f32.mrb[0].mxu0
      %v575 = vpop.f32.mrb[0].mxu0
      %v576 = vpop.f32.mrb[0].mxu0
      %577 = vdwg.mxu0
      %vm578 = vcmask 64512
      %v579 = vsel %vm578, %v573, -inf
      %580 = vmax.xlane.f32.xlu0 %v579
      %v581 = vpop.xlane.xlu0 %580
      %v582 = vsub.f32 %v573, %v581
      %v583 = vmul.f32 %v582, 1.442695
      %v584 = vpow.pop %v583
      %v585 = vsel %vm578, %v584, 0.0
      %586 = vadd.xlane.f32.xlu0 %v585
      %v587 = vpop.xlane.xlu0 %586
      %v588 = vrcp.pop %v587
      %v589 = vmul.f32 %v584, %v588
      %v590 = vpack.c.bf16 %v589, %v589
      %591 = vrot.lane.b32.xlu0 %v527, 64
      %v592 = vpop.permute.xlu0 %591
      %v594 = vsel %vm578, %v590, 0
      %vm596 = vcmask 1043456
      %v598 = vsel %vm596, %v592, 0
      %600 = vmatprep.subr.bf16.mxu0 0
      %601 = vmatpush1.bf16.msra.mxu0 %v598
      %602 = vmatprep.subr.bf16.mxu0 0
      %603 = vmatpush1.bf16.msra.mxu0 0
      %604 = vmatprep.subr.bf16.mxu0 0
      %605 = vmatpush1.bf16.msra.mxu0 0
      %606 = vmatprep.subr.bf16.mxu0 0
      %607 = vmatpush1.bf16.msra.mxu0 0
      %608 = vmatprep.subr.bf16.mxu0 0
      %609 = vmatpush1.bf16.msra.mxu0 0
      %610 = vmatprep.subr.bf16.mxu0 0
      %611 = vmatpush1.bf16.msra.mxu0 0
      %612 = vmatprep.subr.bf16.mxu0 0
      %613 = vmatpush1.bf16.msra.mxu0 0
      %614 = vmatprep.subr.bf16.mxu0 0
      %615 = vmatpush1.bf16.msra.mxu0 0
      %616 = vmatprep.subr.bf16.mxu0 0
      %617 = vmatpush1.bf16.msra.mxu0 0
      %618 = vmatprep.subr.bf16.mxu0 0
      %619 = vmatpush1.bf16.msra.mxu0 0
      %620 = vmatprep.subr.bf16.mxu0 0
      %621 = vmatpush1.bf16.msra.mxu0 0
      %622 = vmatprep.subr.bf16.mxu0 0
      %623 = vmatpush1.bf16.msra.mxu0 0
      %624 = vmatprep.subr.bf16.mxu0 0
      %625 = vmatpush1.bf16.msra.mxu0 0
      %626 = vmatprep.subr.bf16.mxu0 0
      %627 = vmatpush1.bf16.msra.mxu0 0
      %628 = vmatprep.subr.bf16.mxu0 0
      %629 = vmatpush1.bf16.msra.mxu0 0
      %630 = vmatprep.subr.bf16.mxu0 0
      %631 = vmatpush1.bf16.msra.mxu0 0
      %632 = vmatprep.mubr.bf16.mxu0 0
      %633 = vmatmul.mubr.bf16.gmra.mrb[0].mxu0 %v594
      %v634 = vpop.f32.mrb[0].mxu0
      %v635 = vadd.f32 0.0, %v634
      %v636 = vpop.f32.mrb[0].mxu0
      %v637 = vpop.f32.mrb[0].mxu0
      %v638 = vpop.f32.mrb[0].mxu0
      %639 = vdwg.mxu0
      %640 = vrot.lane.b32.xlu0 %v527, 112
      %v641 = vpop.permute.xlu0 %640
      %642 = vrot.lane.b32.xlu0 %v527, 80
      %v643 = vpop.permute.xlu0 %642
      %v645 = vsel %vm531, %v641, 0
      %v648 = vsel %vm531, %v643, 0
      %650 = vmatprep.subr.bf16.mxu0 0
      %651 = vmatpush1.bf16.xpose.msra.mxu0 %v648
      %652 = vmatprep.subr.bf16.mxu0 0
      %653 = vmatpush1.bf16.xpose.msra.mxu0 0
      %654 = vmatprep.subr.bf16.mxu0 0
      %655 = vmatpush1.bf16.xpose.msra.mxu0 0
      %656 = vmatprep.subr.bf16.mxu0 0
      %657 = vmatpush1.bf16.xpose.msra.mxu0 0
      %658 = vmatprep.subr.bf16.mxu0 0
      %659 = vmatpush1.bf16.xpose.msra.mxu0 0
      %660 = vmatprep.subr.bf16.mxu0 0
      %661 = vmatpush1.bf16.xpose.msra.mxu0 0
      %662 = vmatprep.subr.bf16.mxu0 0
      %663 = vmatpush1.bf16.xpose.msra.mxu0 0
      %664 = vmatprep.subr.bf16.mxu0 0
      %665 = vmatpush1.bf16.xpose.msra.mxu0 0
      %666 = vmatprep.subr.bf16.mxu0 0
      %667 = vmatpush1.bf16.xpose.msra.mxu0 0
      %668 = vmatprep.subr.bf16.mxu0 0
      %669 = vmatpush1.bf16.xpose.msra.mxu0 0
      %670 = vmatprep.subr.bf16.mxu0 0
      %671 = vmatpush1.bf16.xpose.msra.mxu0 0
      %672 = vmatprep.subr.bf16.mxu0 0
      %673 = vmatpush1.bf16.xpose.msra.mxu0 0
      %674 = vmatprep.subr.bf16.mxu0 0
      %675 = vmatpush1.bf16.xpose.msra.mxu0 0
      %676 = vmatprep.subr.bf16.mxu0 0
      %677 = vmatpush1.bf16.xpose.msra.mxu0 0
      %678 = vmatprep.subr.bf16.mxu0 0
      %679 = vmatpush1.bf16.xpose.msra.mxu0 0
      %680 = vmatprep.subr.bf16.mxu0 0
      %681 = vmatpush1.bf16.xpose.msra.mxu0 0
      %682 = vmatprep.mubr.bf16.mxu0 0
      %683 = vmatmul.mubr.bf16.gmra.mrb[0].mxu0 %v645
      %v684 = vpop.f32.mrb[0].mxu0
      %v685 = vadd.f32 %v429, %v684
      %v686 = vpop.f32.mrb[0].mxu0
      %v687 = vpop.f32.mrb[0].mxu0
      %v688 = vpop.f32.mrb[0].mxu0
      %689 = vdwg.mxu0
      %v690 = vsel %vm578, %v685, -inf
      %691 = vmax.xlane.f32.xlu0 %v690
      %v692 = vpop.xlane.xlu0 %691
      %v693 = vsub.f32 %v685, %v692
      %v694 = vmul.f32 %v693, 1.442695
      %v695 = vpow.pop %v694
      %v696 = vsel %vm578, %v695, 0.0
      %697 = vadd.xlane.f32.xlu0 %v696
      %v698 = vpop.xlane.xlu0 %697
      %v699 = vrcp.pop %v698
      %v700 = vmul.f32 %v695, %v699
      %v701 = vpack.c.bf16 %v700, %v700
      %702 = vrot.lane.b32.xlu0 %v527, 48
      %v703 = vpop.permute.xlu0 %702
      %v705 = vsel %vm578, %v701, 0
      %v708 = vsel %vm596, %v703, 0
      %710 = vmatprep.subr.bf16.mxu0 0
      %711 = vmatpush1.bf16.msra.mxu0 %v708
      %712 = vmatprep.subr.bf16.mxu0 0
      %713 = vmatpush1.bf16.msra.mxu0 0
      %714 = vmatprep.subr.bf16.mxu0 0
      %715 = vmatpush1.bf16.msra.mxu0 0
      %716 = vmatprep.subr.bf16.mxu0 0
      %717 = vmatpush1.bf16.msra.mxu0 0
      %718 = vmatprep.subr.bf16.mxu0 0
      %719 = vmatpush1.bf16.msra.mxu0 0
      %720 = vmatprep.subr.bf16.mxu0 0
      %721 = vmatpush1.bf16.msra.mxu0 0
      %722 = vmatprep.subr.bf16.mxu0 0
      %723 = vmatpush1.bf16.msra.mxu0 0
      %724 = vmatprep.subr.bf16.mxu0 0
      %725 = vmatpush1.bf16.msra.mxu0 0
      %726 = vmatprep.subr.bf16.mxu0 0
      %727 = vmatpush1.bf16.msra.mxu0 0
      %728 = vmatprep.subr.bf16.mxu0 0
      %729 = vmatpush1.bf16.msra.mxu0 0
      %730 = vmatprep.subr.bf16.mxu0 0
      %731 = vmatpush1.bf16.msra.mxu0 0
      %732 = vmatprep.subr.bf16.mxu0 0
      %733 = vmatpush1.bf16.msra.mxu0 0
      %734 = vmatprep.subr.bf16.mxu0 0
      %735 = vmatpush1.bf16.msra.mxu0 0
      %736 = vmatprep.subr.bf16.mxu0 0
      %737 = vmatpush1.bf16.msra.mxu0 0
      %738 = vmatprep.subr.bf16.mxu0 0
      %739 = vmatpush1.bf16.msra.mxu0 0
      %740 = vmatprep.subr.bf16.mxu0 0
      %741 = vmatpush1.bf16.msra.mxu0 0
      %742 = vmatprep.mubr.bf16.mxu0 0
      %743 = vmatmul.mubr.bf16.gmra.mrb[0].mxu0 %v705
      %v744 = vpop.f32.mrb[0].mxu0
      %v745 = vadd.f32 0.0, %v744
      %v746 = vpop.f32.mrb[0].mxu0
      %v747 = vpop.f32.mrb[0].mxu0
      %v748 = vpop.f32.mrb[0].mxu0
      %749 = vdwg.mxu0
      %751 = vrot.lane.b32.xlu0 %v745, 16
      %v752 = vpop.permute.xlu0 %751
      %v754 = vsel %vm531, %v635, %v752
      %v755 = vpack.c.bf16 %v754, %v754
      %v760 = vunpack.c.l.b16 %v434
      %v761 = vunpack.c.l.b16 %v435
      %v762 = vunpack.c.l.b16 %v436
      %v763 = vunpack.c.l.b16 %v437
      %v764 = vpack.c.b16 %v761, %v760
      %v765 = vpack.c.b16 %v763, %v762
      %v769 = vsel %vm450, %v755, 0
      %771 = vmatprep.subr.bf16.mxu0 0
      %772 = vmatpush1.bf16.msra.mxu0 %v764
      %773 = vmatprep.subr.bf16.mxu0 0
      %774 = vmatpush1.bf16.msra.mxu0 %v765
      %775 = vmatprep.subr.bf16.mxu0 0
      %776 = vmatpush1.bf16.msra.mxu0 0
      %777 = vmatprep.subr.bf16.mxu0 0
      %778 = vmatpush1.bf16.msra.mxu0 0
      %779 = vmatprep.subr.bf16.mxu0 0
      %780 = vmatpush1.bf16.msra.mxu0 0
      %781 = vmatprep.subr.bf16.mxu0 0
      %782 = vmatpush1.bf16.msra.mxu0 0
      %783 = vmatprep.subr.bf16.mxu0 0
      %784 = vmatpush1.bf16.msra.mxu0 0
      %785 = vmatprep.subr.bf16.mxu0 0
      %786 = vmatpush1.bf16.msra.mxu0 0
      %787 = vmatprep.subr.bf16.mxu0 0
      %788 = vmatpush1.bf16.msra.mxu0 0
      %789 = vmatprep.subr.bf16.mxu0 0
      %790 = vmatpush1.bf16.msra.mxu0 0
      %791 = vmatprep.subr.bf16.mxu0 0
      %792 = vmatpush1.bf16.msra.mxu0 0
      %793 = vmatprep.subr.bf16.mxu0 0
      %794 = vmatpush1.bf16.msra.mxu0 0
      %795 = vmatprep.subr.bf16.mxu0 0
      %796 = vmatpush1.bf16.msra.mxu0 0
      %797 = vmatprep.subr.bf16.mxu0 0
      %798 = vmatpush1.bf16.msra.mxu0 0
      %799 = vmatprep.subr.bf16.mxu0 0
      %800 = vmatpush1.bf16.msra.mxu0 0
      %801 = vmatprep.subr.bf16.mxu0 0
      %802 = vmatpush1.bf16.msra.mxu0 0
      %803 = vmatprep.mubr.bf16.mxu0 0
      %804 = vmatmul.mubr.bf16.gmra.mrb[0].mxu0 %v769
      %v805 = vpop.f32.mrb[0].mxu0
      %v806 = vadd.f32 0.0, %v805
      %v807 = vpop.f32.mrb[0].mxu0
      %v808 = vpop.f32.mrb[0].mxu0
      %v809 = vpop.f32.mrb[0].mxu0
      %810 = vdwg.mxu0
      %v811 = vadd.f32 %v421, %v806
      %v813 = vlaneseq
      %v814 = vshrl.u32 %v813, 7
      %v815 = vsub.s32 0, %v814
      %v816 = vrot.slane %v447, %v815
      %v818 = vadd.f32 %v811, %v816
      %v819 = vsel %vm450, %v818, 0.0
      %820 = vadd.xlane.f32.xlu0 %v819
      %v821 = vpop.xlane.xlu0 %820
      %v822 = vmul.f32 %v821, %v454
      %v823 = vsub.f32 %v818, %v822
      %v824 = vmul.f32 %v823, %v823
      %v825 = vsel %vm450, %v824, 0.0
      %826 = vadd.xlane.f32.xlu0 %v825
      %v827 = vpop.xlane.xlu0 %826
      %v828 = vmul.f32 %v827, %v454
      %v829 = vadd.f32 %v828, 1e-06
      %v830 = vrsqrt.pop %v829
      %v831 = vmul.f32 %v823, %v830
      %v832 = vpack.c.bf16 %v831, %v831
      %v834 = vlaneseq
      %v835 = vshrl.u32 %v834, 7
      %v836 = vsub.s32 0, %v835
      %v837 = vrot.slane %v448, %v836
      %v843 = vunpack.c.l.b16 %v438
      %v844 = vunpack.c.l.b16 %v439
      %v845 = vunpack.c.l.b16 %v440
      %v846 = vunpack.c.l.b16 %v441
      %v847 = vpack.c.b16 %v844, %v843
      %v848 = vpack.c.b16 %v846, %v845
      %v852 = vsel %vm450, %v832, 0
      %854 = vmatprep.subr.bf16.mxu0 0
      %855 = vmatpush1.bf16.msra.mxu0 %v847
      %856 = vmatprep.subr.bf16.mxu0 0
      %857 = vmatpush1.bf16.msra.mxu0 %v848
      %858 = vmatprep.subr.bf16.mxu0 0
      %859 = vmatpush1.bf16.msra.mxu0 0
      %860 = vmatprep.subr.bf16.mxu0 0
      %861 = vmatpush1.bf16.msra.mxu0 0
      %862 = vmatprep.subr.bf16.mxu0 0
      %863 = vmatpush1.bf16.msra.mxu0 0
      %864 = vmatprep.subr.bf16.mxu0 0
      %865 = vmatpush1.bf16.msra.mxu0 0
      %866 = vmatprep.subr.bf16.mxu0 0
      %867 = vmatpush1.bf16.msra.mxu0 0
      %868 = vmatprep.subr.bf16.mxu0 0
      %869 = vmatpush1.bf16.msra.mxu0 0
      %870 = vmatprep.subr.bf16.mxu0 0
      %871 = vmatpush1.bf16.msra.mxu0 0
      %872 = vmatprep.subr.bf16.mxu0 0
      %873 = vmatpush1.bf16.msra.mxu0 0
      %874 = vmatprep.subr.bf16.mxu0 0
      %875 = vmatpush1.bf16.msra.mxu0 0
      %876 = vmatprep.subr.bf16.mxu0 0
      %877 = vmatpush1.bf16.msra.mxu0 0
      %878 = vmatprep.subr.bf16.mxu0 0
      %879 = vmatpush1.bf16.msra.mxu0 0
      %880 = vmatprep.subr.bf16.mxu0 0
      %881 = vmatpush1.bf16.msra.mxu0 0
      %882 = vmatprep.subr.bf16.mxu0 0
      %883 = vmatpush1.bf16.msra.mxu0 0
      %884 = vmatprep.subr.bf16.mxu0 0
      %885 = vmatpush1.bf16.msra.mxu0 0
      %886 = vmatprep.mubr.bf16.mxu0 0
      %887 = vmatmul.mubr.bf16.gmra.mrb[0].mxu0 %v852
      %v888 = vpop.f32.mrb[0].mxu0
      %v889 = vadd.f32 %v837, %v888
      %v890 = vpop.f32.mrb[0].mxu0
      %v891 = vpop.f32.mrb[0].mxu0
      %v892 = vpop.f32.mrb[0].mxu0
      %893 = vdwg.mxu0
      %v894 = vmul.f32 %v889, %v889
      %v895 = vmul.f32 %v889, %v894
      %v896 = vmul.f32 %v895, 0.044715
      %v897 = vadd.f32 %v889, %v896
      %v898 = vmul.f32 %v897, 0.7978846
      %v899 = vtanh.pop %v898
      %v900 = vadd.f32 %v899, 1.0
      %v901 = vmul.f32 %v900, 0.5
      %v902 = vmul.f32 %v889, %v901
      %v903 = vpack.c.bf16 %v902, %v902
      %v905 = vlaneseq
      %v906 = vshrl.u32 %v905, 7
      %v907 = vsub.s32 0, %v906
      %v908 = vrot.slane %v449, %v907
      %v914 = vunpack.c.l.b16 %v442
      %v915 = vunpack.c.l.b16 %v443
      %v916 = vunpack.c.l.b16 %v444
      %v917 = vunpack.c.l.b16 %v445
      %v918 = vpack.c.b16 %v915, %v914
      %v919 = vpack.c.b16 %v917, %v916
      %922 = vmatprep.subr.bf16.mxu0 0
      %923 = vmatpush1.bf16.xpose.msra.mxu0 %v918
      %924 = vmatprep.subr.bf16.mxu0 0
      %925 = vmatpush1.bf16.xpose.msra.mxu0 %v919
      %926 = vmatprep.subr.bf16.mxu0 0
      %927 = vmatpush1.bf16.xpose.msra.mxu0 0
      %928 = vmatprep.subr.bf16.mxu0 0
      %929 = vmatpush1.bf16.xpose.msra.mxu0 0
      %930 = vmatprep.subr.bf16.mxu0 0
      %931 = vmatpush1.bf16.xpose.msra.mxu0 0
      %932 = vmatprep.subr.bf16.mxu0 0
      %933 = vmatpush1.bf16.xpose.msra.mxu0 0
      %934 = vmatprep.subr.bf16.mxu0 0
      %935 = vmatpush1.bf16.xpose.msra.mxu0 0
      %936 = vmatprep.subr.bf16.mxu0 0
      %937 = vmatpush1.bf16.xpose.msra.mxu0 0
      %938 = vmatprep.subr.bf16.mxu0 0
      %939 = vmatpush1.bf16.xpose.msra.mxu0 0
      %940 = vmatprep.subr.bf16.mxu0 0
      %941 = vmatpush1.bf16.xpose.msra.mxu0 0
      %942 = vmatprep.subr.bf16.mxu0 0
      %943 = vmatpush1.bf16.xpose.msra.mxu0 0
      %944 = vmatprep.subr.bf16.mxu0 0
      %945 = vmatpush1.bf16.xpose.msra.mxu0 0
      %946 = vmatprep.subr.bf16.mxu0 0
      %947 = vmatpush1.bf16.xpose.msra.mxu0 0
      %948 = vmatprep.subr.bf16.mxu0 0
      %949 = vmatpush1.bf16.xpose.msra.mxu0 0
      %950 = vmatprep.subr.bf16.mxu0 0
      %951 = vmatpush1.bf16.xpose.msra.mxu0 0
      %952 = vmatprep.subr.bf16.mxu0 0
      %953 = vmatpush1.bf16.xpose.msra.mxu0 0
      %954 = vmatprep.mubr.bf16.mxu0 0
      %955 = vmatmul.mubr.bf16.gmra.mrb[0].mxu0 %v903
      %v956 = vpop.f32.mrb[0].mxu0
      %v957 = vadd.f32 %v908, %v956
      %v958 = vpop.f32.mrb[0].mxu0
      %v959 = vpop.f32.mrb[0].mxu0
      %v960 = vpop.f32.mrb[0].mxu0
      %961 = vdwg.mxu0
      %v962 = vadd.f32 %v818, %v957
      %s963 = scalar_lea.vmem %s3, 64
      %v964 = vld [vmem:[%s963] sm:$0xf]
      %v965 = vld [vmem:[%s963 + $0x10] sm:$0xf]
      %v966 = vld [vmem:[%s963 + $0x20] sm:$0xf]
      %v967 = vld [vmem:[%s963 + $0x30] sm:$0xf]
      %v968 = vld [vmem:[%s963 + $0x4] sm:$0xf]
      %v969 = vld [vmem:[%s963 + $0x14] sm:$0xf]
      %v970 = vld [vmem:[%s963 + $0x24] sm:$0xf]
      %v971 = vld [vmem:[%s963 + $0x34] sm:$0xf]
      %v972 = vld [vmem:[%s963 + $0x8] sm:$0xf]
      %v973 = vld [vmem:[%s963 + $0x18] sm:$0xf]
      %v974 = vld [vmem:[%s963 + $0x28] sm:$0xf]
      %v975 = vld [vmem:[%s963 + $0x38] sm:$0xf]
      %v976 = vld [vmem:[%s963 + $0xc] sm:$0xf]
      %v977 = vld [vmem:[%s963 + $0x1c] sm:$0xf]
      %v978 = vld [vmem:[%s963 + $0x2c] sm:$0xf]
      %v979 = vld [vmem:[%s963 + $0x3c] sm:$0xf]
      %s980 = scalar_lea.vmem %s4, 4
      %v981 = vld [vmem:[%s980] sm:$0x1]
      %v982 = vld [vmem:[%s980 + $0x1] sm:$0x1]
      %v983 = vld [vmem:[%s980 + $0x2] sm:$0x1]
      %v984 = vld [vmem:[%s980 + $0x3] sm:$0x1]
      %v985 = vsel %vm450, %v962, 0.0
      %986 = vadd.xlane.f32.xlu0 %v985
      %v987 = vpop.xlane.xlu0 %986
      %v988 = vmul.f32 %v987, %v454
      %v989 = vsub.f32 %v962, %v988
      %v990 = vmul.f32 %v989, %v989
      %v991 = vsel %vm450, %v990, 0.0
      %992 = vadd.xlane.f32.xlu0 %v991
      %v993 = vpop.xlane.xlu0 %992
      %v994 = vmul.f32 %v993, %v454
      %v995 = vadd.f32 %v994, 1e-06
      %v996 = vrsqrt.pop %v995
      %v997 = vmul.f32 %v989, %v996
      %v998 = vpack.c.bf16 %v997, %v997
      %v1000 = vlaneseq
      %v1001 = vshrl.u32 %v1000, 7
      %v1002 = vsub.s32 0, %v1001
      %v1003 = vrot.slane %v981, %v1002
      %v1009 = vunpack.c.l.b16 %v964
      %v1010 = vunpack.c.l.b16 %v965
      %v1011 = vunpack.c.l.b16 %v966
      %v1012 = vunpack.c.l.b16 %v967
      %v1013 = vpack.c.b16 %v1010, %v1009
      %v1014 = vpack.c.b16 %v1012, %v1011
      %v1018 = vsel %vm450, %v998, 0
      %1020 = vmatprep.subr.bf16.mxu0 0
      %1021 = vmatpush1.bf16.msra.mxu0 %v1013
      %1022 = vmatprep.subr.bf16.mxu0 0
      %1023 = vmatpush1.bf16.msra.mxu0 %v1014
      %1024 = vmatprep.subr.bf16.mxu0 0
      %1025 = vmatpush1.bf16.msra.mxu0 0
      %1026 = vmatprep.subr.bf16.mxu0 0
      %1027 = vmatpush1.bf16.msra.mxu0 0
      %1028 = vmatprep.subr.bf16.mxu0 0
      %1029 = vmatpush1.bf16.msra.mxu0 0
      %1030 = vmatprep.subr.bf16.mxu0 0
      %1031 = vmatpush1.bf16.msra.mxu0 0
      %1032 = vmatprep.subr.bf16.mxu0 0
      %1033 = vmatpush1.bf16.msra.mxu0 0
      %1034 = vmatprep.subr.bf16.mxu0 0
      %1035 = vmatpush1.bf16.msra.mxu0 0
      %1036 = vmatprep.subr.bf16.mxu0 0
      %1037 = vmatpush1.bf16.msra.mxu0 0
      %1038 = vmatprep.subr.bf16.mxu0 0
      %1039 = vmatpush1.bf16.msra.mxu0 0
      %1040 = vmatprep.subr.bf16.mxu0 0
      %1041 = vmatpush1.bf16.msra.mxu0 0
      %1042 = vmatprep.subr.bf16.mxu0 0
      %1043 = vmatpush1.bf16.msra.mxu0 0
      %1044 = vmatprep.subr.bf16.mxu0 0
      %1045 = vmatpush1.bf16.msra.mxu0 0
      %1046 = vmatprep.subr.bf16.mxu0 0
      %1047 = vmatpush1.bf16.msra.mxu0 0
      %1048 = vmatprep.subr.bf16.mxu0 0
      %1049 = vmatpush1.bf16.msra.mxu0 0
      %1050 = vmatprep.subr.bf16.mxu0 0
      %1051 = vmatpush1.bf16.msra.mxu0 0
      %1052 = vmatprep.mubr.bf16.mxu0 0
      %1053 = vmatmul.mubr.bf16.gmra.mrb[0].mxu0 %v1018
      %v1054 = vpop.f32.mrb[0].mxu0
      %v1055 = vadd.f32 %v1003, %v1054
      %v1056 = vpop.f32.mrb[0].mxu0
      %v1057 = vpop.f32.mrb[0].mxu0
      %v1058 = vpop.f32.mrb[0].mxu0
      %1059 = vdwg.mxu0
      %v1060 = vpack.c.bf16 %v1055, %v1055
      %1062 = vrot.lane.b32.xlu0 %v1060, 96
      %v1063 = vpop.permute.xlu0 %1062
      %v1065 = vsel %vm531, %v1060, 0
      %v1068 = vsel %vm531, %v1063, 0
      %1070 = vmatprep.subr.bf16.mxu0 0
      %1071 = vmatpush1.bf16.xpose.msra.mxu0 %v1068
      %1072 = vmatprep.subr.bf16.mxu0 0
      %1073 = vmatpush1.bf16.xpose.msra.mxu0 0
      %1074 = vmatprep.subr.bf16.mxu0 0
      %1075 = vmatpush1.bf16.xpose.msra.mxu0 0
      %1076 = vmatprep.subr.bf16.mxu0 0
      %1077 = vmatpush1.bf16.xpose.msra.mxu0 0
      %1078 = vmatprep.subr.bf16.mxu0 0
      %1079 = vmatpush1.bf16.xpose.msra.mxu0 0
      %1080 = vmatprep.subr.bf16.mxu0 0
      %1081 = vmatpush1.bf16.xpose.msra.mxu0 0
      %1082 = vmatprep.subr.bf16.mxu0 0
      %1083 = vmatpush1.bf16.xpose.msra.mxu0 0
      %1084 = vmatprep.subr.bf16.mxu0 0
      %1085 = vmatpush1.bf16.xpose.msra.mxu0 0
      %1086 = vmatprep.subr.bf16.mxu0 0
      %1087 = vmatpush1.bf16.xpose.msra.mxu0 0
      %1088 = vmatprep.subr.bf16.mxu0 0
      %1089 = vmatpush1.bf16.xpose.msra.mxu0 0
      %1090 = vmatprep.subr.bf16.mxu0 0
      %1091 = vmatpush1.bf16.xpose.msra.mxu0 0
      %1092 = vmatprep.subr.bf16.mxu0 0
      %1093 = vmatpush1.bf16.xpose.msra.mxu0 0
      %1094 = vmatprep.subr.bf16.mxu0 0
      %1095 = vmatpush1.bf16.xpose.msra.mxu0 0
      %1096 = vmatprep.subr.bf16.mxu0 0
      %1097 = vmatpush1.bf16.xpose.msra.mxu0 0
      %1098 = vmatprep.subr.bf16.mxu0 0
      %1099 = vmatpush1.bf16.xpose.msra.mxu0 0
      %1100 = vmatprep.subr.bf16.mxu0 0
      %1101 = vmatpush1.bf16.xpose.msra.mxu0 0
      %1102 = vmatprep.mubr.bf16.mxu0 0
      %1103 = vmatmul.mubr.bf16.gmra.mrb[0].mxu0 %v1065
      %v1104 = vpop.f32.mrb[0].mxu0
      %v1105 = vadd.f32 %v429, %v1104
      %v1106 = vpop.f32.mrb[0].mxu0
      %v1107 = vpop.f32.mrb[0].mxu0
      %v1108 = vpop.f32.mrb[0].mxu0
      %1109 = vdwg.mxu0
      %v1110 = vsel %vm578, %v1105, -inf
      %1111 = vmax.xlane.f32.xlu0 %v1110
      %v1112 = vpop.xlane.xlu0 %1111
      %v1113 = vsub.f32 %v1105, %v1112
      %v1114 = vmul.f32 %v1113, 1.442695
      %v1115 = vpow.pop %v1114
      %v1116 = vsel %vm578, %v1115, 0.0
      %1117 = vadd.xlane.f32.xlu0 %v1116
      %v1118 = vpop.xlane.xlu0 %1117
      %v1119 = vrcp.pop %v1118
      %v1120 = vmul.f32 %v1115, %v1119
      %v1121 = vpack.c.bf16 %v1120, %v1120
      %1122 = vrot.lane.b32.xlu0 %v1060, 64
      %v1123 = vpop.permute.xlu0 %1122
      %v1125 = vsel %vm578, %v1121, 0
      %v1128 = vsel %vm596, %v1123, 0
      %1130 = vmatprep.subr.bf16.mxu0 0
      %1131 = vmatpush1.bf16.msra.mxu0 %v1128
      %1132 = vmatprep.subr.bf16.mxu0 0
      %1133 = vmatpush1.bf16.msra.mxu0 0
      %1134 = vmatprep.subr.bf16.mxu0 0
      %1135 = vmatpush1.bf16.msra.mxu0 0
      %1136 = vmatprep.subr.bf16.mxu0 0
      %1137 = vmatpush1.bf16.msra.mxu0 0
      %1138 = vmatprep.subr.bf16.mxu0 0
      %1139 = vmatpush1.bf16.msra.mxu0 0
      %1140 = vmatprep.subr.bf16.mxu0 0
      %1141 = vmatpush1.bf16.msra.mxu0 0
      %1142 = vmatprep.subr.bf16.mxu0 0
      %1143 = vmatpush1.bf16.msra.mxu0 0
      %1144 = vmatprep.subr.bf16.mxu0 0
      %1145 = vmatpush1.bf16.msra.mxu0 0
      %1146 = vmatprep.subr.bf16.mxu0 0
      %1147 = vmatpush1.bf16.msra.mxu0 0
      %1148 = vmatprep.subr.bf16.mxu0 0
      %1149 = vmatpush1.bf16.msra.mxu0 0
      %1150 = vmatprep.subr.bf16.mxu0 0
      %1151 = vmatpush1.bf16.msra.mxu0 0
      %1152 = vmatprep.subr.bf16.mxu0 0
      %1153 = vmatpush1.bf16.msra.mxu0 0
      %1154 = vmatprep.subr.bf16.mxu0 0
      %1155 = vmatpush1.bf16.msra.mxu0 0
      %1156 = vmatprep.subr.bf16.mxu0 0
      %1157 = vmatpush1.bf16.msra.mxu0 0
      %1158 = vmatprep.subr.bf16.mxu0 0
      %1159 = vmatpush1.bf16.msra.mxu0 0
      %1160 = vmatprep.subr.bf16.mxu0 0
      %1161 = vmatpush1.bf16.msra.mxu0 0
      %1162 = vmatprep.mubr.bf16.mxu0 0
      %1163 = vmatmul.mubr.bf16.gmra.mrb[0].mxu0 %v1125
      %v1164 = vpop.f32.mrb[0].mxu0
      %v1165 = vadd.f32 0.0, %v1164
      %v1166 = vpop.f32.mrb[0].mxu0
      %v1167 = vpop.f32.mrb[0].mxu0
      %v1168 = vpop.f32.mrb[0].mxu0
      %1169 = vdwg.mxu0
      %1170 = vrot.lane.b32.xlu0 %v1060, 112
      %v1171 = vpop.permute.xlu0 %1170
      %1172 = vrot.lane.b32.xlu0 %v1060, 80
      %v1173 = vpop.permute.xlu0 %1172
      %v1175 = vsel %vm531, %v1171, 0
      %v1178 = vsel %vm531, %v1173, 0
      %1180 = vmatprep.subr.bf16.mxu0 0
      %1181 = vmatpush1.bf16.xpose.msra.mxu0 %v1178
      %1182 = vmatprep.subr.bf16.mxu0 0
      %1183 = vmatpush1.bf16.xpose.msra.mxu0 0
      %1184 = vmatprep.subr.bf16.mxu0 0
      %1185 = vmatpush1.bf16.xpose.msra.mxu0 0
      %1186 = vmatprep.subr.bf16.mxu0 0
      %1187 = vmatpush1.bf16.xpose.msra.mxu0 0
      %1188 = vmatprep.subr.bf16.mxu0 0
      %1189 = vmatpush1.bf16.xpose.msra.mxu0 0
      %1190 = vmatprep.subr.bf16.mxu0 0
      %1191 = vmatpush1.bf16.xpose.msra.mxu0 0
      %1192 = vmatprep.subr.bf16.mxu0 0
      %1193 = vmatpush1.bf16.xpose.msra.mxu0 0
      %1194 = vmatprep.subr.bf16.mxu0 0
      %1195 = vmatpush1.bf16.xpose.msra.mxu0 0
      %1196 = vmatprep.subr.bf16.mxu0 0
      %1197 = vmatpush1.bf16.xpose.msra.mxu0 0
      %1198 = vmatprep.subr.bf16.mxu0 0
      %1199 = vmatpush1.bf16.xpose.msra.mxu0 0
      %1200 = vmatprep.subr.bf16.mxu0 0
      %1201 = vmatpush1.bf16.xpose.msra.mxu0 0
      %1202 = vmatprep.subr.bf16.mxu0 0
      %1203 = vmatpush1.bf16.xpose.msra.mxu0 0
      %1204 = vmatprep.subr.bf16.mxu0 0
      %1205 = vmatpush1.bf16.xpose.msra.mxu0 0
      %1206 = vmatprep.subr.bf16.mxu0 0
      %1207 = vmatpush1.bf16.xpose.msra.mxu0 0
      %1208 = vmatprep.subr.bf16.mxu0 0
      %1209 = vmatpush1.bf16.xpose.msra.mxu0 0
      %1210 = vmatprep.subr.bf16.mxu0 0
      %1211 = vmatpush1.bf16.xpose.msra.mxu0 0
      %1212 = vmatprep.mubr.bf16.mxu0 0
      %1213 = vmatmul.mubr.bf16.gmra.mrb[0].mxu0 %v1175
      %v1214 = vpop.f32.mrb[0].mxu0
      %v1215 = vadd.f32 %v429, %v1214
      %v1216 = vpop.f32.mrb[0].mxu0
      %v1217 = vpop.f32.mrb[0].mxu0
      %v1218 = vpop.f32.mrb[0].mxu0
      %1219 = vdwg.mxu0
      %v1220 = vsel %vm578, %v1215, -inf
      %1221 = vmax.xlane.f32.xlu0 %v1220
      %v1222 = vpop.xlane.xlu0 %1221
      %v1223 = vsub.f32 %v1215, %v1222
      %v1224 = vmul.f32 %v1223, 1.442695
      %v1225 = vpow.pop %v1224
      %v1226 = vsel %vm578, %v1225, 0.0
      %1227 = vadd.xlane.f32.xlu0 %v1226
      %v1228 = vpop.xlane.xlu0 %1227
      %v1229 = vrcp.pop %v1228
      %v1230 = vmul.f32 %v1225, %v1229
      %v1231 = vpack.c.bf16 %v1230, %v1230
      %1232 = vrot.lane.b32.xlu0 %v1060, 48
      %v1233 = vpop.permute.xlu0 %1232
      %v1235 = vsel %vm578, %v1231, 0
      %v1238 = vsel %vm596, %v1233, 0
      %1240 = vmatprep.subr.bf16.mxu0 0
      %1241 = vmatpush1.bf16.msra.mxu0 %v1238
      %1242 = vmatprep.subr.bf16.mxu0 0
      %1243 = vmatpush1.bf16.msra.mxu0 0
      %1244 = vmatprep.subr.bf16.mxu0 0
      %1245 = vmatpush1.bf16.msra.mxu0 0
      %1246 = vmatprep.subr.bf16.mxu0 0
      %1247 = vmatpush1.bf16.msra.mxu0 0
      %1248 = vmatprep.subr.bf16.mxu0 0
      %1249 = vmatpush1.bf16.msra.mxu0 0
      %1250 = vmatprep.subr.bf16.mxu0 0
      %1251 = vmatpush1.bf16.msra.mxu0 0
      %1252 = vmatprep.subr.bf16.mxu0 0
      %1253 = vmatpush1.bf16.msra.mxu0 0
      %1254 = vmatprep.subr.bf16.mxu0 0
      %1255 = vmatpush1.bf16.msra.mxu0 0
      %1256 = vmatprep.subr.bf16.mxu0 0
      %1257 = vmatpush1.bf16.msra.mxu0 0
      %1258 = vmatprep.subr.bf16.mxu0 0
      %1259 = vmatpush1.bf16.msra.mxu0 0
      %1260 = vmatprep.subr.bf16.mxu0 0
      %1261 = vmatpush1.bf16.msra.mxu0 0
      %1262 = vmatprep.subr.bf16.mxu0 0
      %1263 = vmatpush1.bf16.msra.mxu0 0
      %1264 = vmatprep.subr.bf16.mxu0 0
      %1265 = vmatpush1.bf16.msra.mxu0 0
      %1266 = vmatprep.subr.bf16.mxu0 0
      %1267 = vmatpush1.bf16.msra.mxu0 0
      %1268 = vmatprep.subr.bf16.mxu0 0
      %1269 = vmatpush1.bf16.msra.mxu0 0
      %1270 = vmatprep.subr.bf16.mxu0 0
      %1271 = vmatpush1.bf16.msra.mxu0 0
      %1272 = vmatprep.mubr.bf16.mxu0 0
      %1273 = vmatmul.mubr.bf16.gmra.mrb[0].mxu0 %v1235
      %v1274 = vpop.f32.mrb[0].mxu0
      %v1275 = vadd.f32 0.0, %v1274
      %v1276 = vpop.f32.mrb[0].mxu0
      %v1277 = vpop.f32.mrb[0].mxu0
      %v1278 = vpop.f32.mrb[0].mxu0
      %1279 = vdwg.mxu0
      %1281 = vrot.lane.b32.xlu0 %v1275, 16
      %v1282 = vpop.permute.xlu0 %1281
      %v1284 = vsel %vm531, %v1165, %v1282
      %v1285 = vpack.c.bf16 %v1284, %v1284
      %v1290 = vunpack.c.l.b16 %v968
      %v1291 = vunpack.c.l.b16 %v969
      %v1292 = vunpack.c.l.b16 %v970
      %v1293 = vunpack.c.l.b16 %v971
      %v1294 = vpack.c.b16 %v1291, %v1290
      %v1295 = vpack.c.b16 %v1293, %v1292
      %v1299 = vsel %vm450, %v1285, 0
      %1301 = vmatprep.subr.bf16.mxu0 0
      %1302 = vmatpush1.bf16.msra.mxu0 %v1294
      %1303 = vmatprep.subr.bf16.mxu0 0
      %1304 = vmatpush1.bf16.msra.mxu0 %v1295
      %1305 = vmatprep.subr.bf16.mxu0 0
      %1306 = vmatpush1.bf16.msra.mxu0 0
      %1307 = vmatprep.subr.bf16.mxu0 0
      %1308 = vmatpush1.bf16.msra.mxu0 0
      %1309 = vmatprep.subr.bf16.mxu0 0
      %1310 = vmatpush1.bf16.msra.mxu0 0
      %1311 = vmatprep.subr.bf16.mxu0 0
      %1312 = vmatpush1.bf16.msra.mxu0 0
      %1313 = vmatprep.subr.bf16.mxu0 0
      %1314 = vmatpush1.bf16.msra.mxu0 0
      %1315 = vmatprep.subr.bf16.mxu0 0
      %1316 = vmatpush1.bf16.msra.mxu0 0
      %1317 = vmatprep.subr.bf16.mxu0 0
      %1318 = vmatpush1.bf16.msra.mxu0 0
      %1319 = vmatprep.subr.bf16.mxu0 0
      %1320 = vmatpush1.bf16.msra.mxu0 0
      %1321 = vmatprep.subr.bf16.mxu0 0
      %1322 = vmatpush1.bf16.msra.mxu0 0
      %1323 = vmatprep.subr.bf16.mxu0 0
      %1324 = vmatpush1.bf16.msra.mxu0 0
      %1325 = vmatprep.subr.bf16.mxu0 0
      %1326 = vmatpush1.bf16.msra.mxu0 0
      %1327 = vmatprep.subr.bf16.mxu0 0
      %1328 = vmatpush1.bf16.msra.mxu0 0
      %1329 = vmatprep.subr.bf16.mxu0 0
      %1330 = vmatpush1.bf16.msra.mxu0 0
      %1331 = vmatprep.subr.bf16.mxu0 0
      %1332 = vmatpush1.bf16.msra.mxu0 0
      %1333 = vmatprep.mubr.bf16.mxu0 0
      %1334 = vmatmul.mubr.bf16.gmra.mrb[0].mxu0 %v1299
      %v1335 = vpop.f32.mrb[0].mxu0
      %v1336 = vadd.f32 0.0, %v1335
      %v1337 = vpop.f32.mrb[0].mxu0
      %v1338 = vpop.f32.mrb[0].mxu0
      %v1339 = vpop.f32.mrb[0].mxu0
      %1340 = vdwg.mxu0
      %v1341 = vadd.f32 %v962, %v1336
      %v1343 = vlaneseq
      %v1344 = vshrl.u32 %v1343, 7
      %v1345 = vsub.s32 0, %v1344
      %v1346 = vrot.slane %v982, %v1345
      %v1348 = vadd.f32 %v1341, %v1346
      %v1349 = vsel %vm450, %v1348, 0.0
      %1350 = vadd.xlane.f32.xlu0 %v1349
      %v1351 = vpop.xlane.xlu0 %1350
      %v1352 = vmul.f32 %v1351, %v454
      %v1353 = vsub.f32 %v1348, %v1352
      %v1354 = vmul.f32 %v1353, %v1353
      %v1355 = vsel %vm450, %v1354, 0.0
      %1356 = vadd.xlane.f32.xlu0 %v1355
      %v1357 = vpop.xlane.xlu0 %1356
      %v1358 = vmul.f32 %v1357, %v454
      %v1359 = vadd.f32 %v1358, 1e-06
      %v1360 = vrsqrt.pop %v1359
      %v1361 = vmul.f32 %v1353, %v1360
      %v1362 = vpack.c.bf16 %v1361, %v1361
      %v1364 = vlaneseq
      %v1365 = vshrl.u32 %v1364, 7
      %v1366 = vsub.s32 0, %v1365
      %v1367 = vrot.slane %v983, %v1366
      %v1373 = vunpack.c.l.b16 %v972
      %v1374 = vunpack.c.l.b16 %v973
      %v1375 = vunpack.c.l.b16 %v974
      %v1376 = vunpack.c.l.b16 %v975
      %v1377 = vpack.c.b16 %v1374, %v1373
      %v1378 = vpack.c.b16 %v1376, %v1375
      %v1382 = vsel %vm450, %v1362, 0
      %1384 = vmatprep.subr.bf16.mxu0 0
      %1385 = vmatpush1.bf16.msra.mxu0 %v1377
      %1386 = vmatprep.subr.bf16.mxu0 0
      %1387 = vmatpush1.bf16.msra.mxu0 %v1378
      %1388 = vmatprep.subr.bf16.mxu0 0
      %1389 = vmatpush1.bf16.msra.mxu0 0
      %1390 = vmatprep.subr.bf16.mxu0 0
      %1391 = vmatpush1.bf16.msra.mxu0 0
      %1392 = vmatprep.subr.bf16.mxu0 0
      %1393 = vmatpush1.bf16.msra.mxu0 0
      %1394 = vmatprep.subr.bf16.mxu0 0
      %1395 = vmatpush1.bf16.msra.mxu0 0
      %1396 = vmatprep.subr.bf16.mxu0 0
      %1397 = vmatpush1.bf16.msra.mxu0 0
      %1398 = vmatprep.subr.bf16.mxu0 0
      %1399 = vmatpush1.bf16.msra.mxu0 0
      %1400 = vmatprep.subr.bf16.mxu0 0
      %1401 = vmatpush1.bf16.msra.mxu0 0
      %1402 = vmatprep.subr.bf16.mxu0 0
      %1403 = vmatpush1.bf16.msra.mxu0 0
      %1404 = vmatprep.subr.bf16.mxu0 0
      %1405 = vmatpush1.bf16.msra.mxu0 0
      %1406 = vmatprep.subr.bf16.mxu0 0
      %1407 = vmatpush1.bf16.msra.mxu0 0
      %1408 = vmatprep.subr.bf16.mxu0 0
      %1409 = vmatpush1.bf16.msra.mxu0 0
      %1410 = vmatprep.subr.bf16.mxu0 0
      %1411 = vmatpush1.bf16.msra.mxu0 0
      %1412 = vmatprep.subr.bf16.mxu0 0
      %1413 = vmatpush1.bf16.msra.mxu0 0
      %1414 = vmatprep.subr.bf16.mxu0 0
      %1415 = vmatpush1.bf16.msra.mxu0 0
      %1416 = vmatprep.mubr.bf16.mxu0 0
      %1417 = vmatmul.mubr.bf16.gmra.mrb[0].mxu0 %v1382
      %v1418 = vpop.f32.mrb[0].mxu0
      %v1419 = vadd.f32 %v1367, %v1418
      %v1420 = vpop.f32.mrb[0].mxu0
      %v1421 = vpop.f32.mrb[0].mxu0
      %v1422 = vpop.f32.mrb[0].mxu0
      %1423 = vdwg.mxu0
      %v1424 = vmul.f32 %v1419, %v1419
      %v1425 = vmul.f32 %v1419, %v1424
      %v1426 = vmul.f32 %v1425, 0.044715
      %v1427 = vadd.f32 %v1419, %v1426
      %v1428 = vmul.f32 %v1427, 0.7978846
      %v1429 = vtanh.pop %v1428
      %v1430 = vadd.f32 %v1429, 1.0
      %v1431 = vmul.f32 %v1430, 0.5
      %v1432 = vmul.f32 %v1419, %v1431
      %v1433 = vpack.c.bf16 %v1432, %v1432
      %v1435 = vlaneseq
      %v1436 = vshrl.u32 %v1435, 7
      %v1437 = vsub.s32 0, %v1436
      %v1438 = vrot.slane %v984, %v1437
      %v1444 = vunpack.c.l.b16 %v976
      %v1445 = vunpack.c.l.b16 %v977
      %v1446 = vunpack.c.l.b16 %v978
      %v1447 = vunpack.c.l.b16 %v979
      %v1448 = vpack.c.b16 %v1445, %v1444
      %v1449 = vpack.c.b16 %v1447, %v1446
      %1452 = vmatprep.subr.bf16.mxu0 0
      %1453 = vmatpush1.bf16.xpose.msra.mxu0 %v1448
      %1454 = vmatprep.subr.bf16.mxu0 0
      %1455 = vmatpush1.bf16.xpose.msra.mxu0 %v1449
      %1456 = vmatprep.subr.bf16.mxu0 0
      %1457 = vmatpush1.bf16.xpose.msra.mxu0 0
      %1458 = vmatprep.subr.bf16.mxu0 0
      %1459 = vmatpush1.bf16.xpose.msra.mxu0 0
      %1460 = vmatprep.subr.bf16.mxu0 0
      %1461 = vmatpush1.bf16.xpose.msra.mxu0 0
      %1462 = vmatprep.subr.bf16.mxu0 0
      %1463 = vmatpush1.bf16.xpose.msra.mxu0 0
      %1464 = vmatprep.subr.bf16.mxu0 0
      %1465 = vmatpush1.bf16.xpose.msra.mxu0 0
      %1466 = vmatprep.subr.bf16.mxu0 0
      %1467 = vmatpush1.bf16.xpose.msra.mxu0 0
      %1468 = vmatprep.subr.bf16.mxu0 0
      %1469 = vmatpush1.bf16.xpose.msra.mxu0 0
      %1470 = vmatprep.subr.bf16.mxu0 0
      %1471 = vmatpush1.bf16.xpose.msra.mxu0 0
      %1472 = vmatprep.subr.bf16.mxu0 0
      %1473 = vmatpush1.bf16.xpose.msra.mxu0 0
      %1474 = vmatprep.subr.bf16.mxu0 0
      %1475 = vmatpush1.bf16.xpose.msra.mxu0 0
      %1476 = vmatprep.subr.bf16.mxu0 0
      %1477 = vmatpush1.bf16.xpose.msra.mxu0 0
      %1478 = vmatprep.subr.bf16.mxu0 0
      %1479 = vmatpush1.bf16.xpose.msra.mxu0 0
      %1480 = vmatprep.subr.bf16.mxu0 0
      %1481 = vmatpush1.bf16.xpose.msra.mxu0 0
      %1482 = vmatprep.subr.bf16.mxu0 0
      %1483 = vmatpush1.bf16.xpose.msra.mxu0 0
      %1484 = vmatprep.mubr.bf16.mxu0 0
      %1485 = vmatmul.mubr.bf16.gmra.mrb[0].mxu0 %v1433
      %v1486 = vpop.f32.mrb[0].mxu0
      %v1487 = vadd.f32 %v1438, %v1486
      %v1488 = vpop.f32.mrb[0].mxu0
      %v1489 = vpop.f32.mrb[0].mxu0
      %v1490 = vpop.f32.mrb[0].mxu0
      %1491 = vdwg.mxu0
      %v1492 = vadd.f32 %v1348, %v1487
      %v1493 = vsel %vm450, %v1492, 0.0
      %1494 = vadd.xlane.f32.xlu0 %v1493
      %v1495 = vpop.xlane.xlu0 %1494
      %v1496 = vmul.f32 %v1495, %v454
      %v1497 = vsub.f32 %v1492, %v1496
      %v1498 = vmul.f32 %v1497, %v1497
      %v1499 = vsel %vm450, %v1498, 0.0
      %1500 = vadd.xlane.f32.xlu0 %v1499
      %v1501 = vpop.xlane.xlu0 %1500
      %v1502 = vmul.f32 %v1501, %v454
      %v1503 = vadd.f32 %v1502, 1e-06
      %v1504 = vrsqrt.pop %v1503
      %v1505 = vmul.f32 %v1497, %v1504
      %v1506 = vld [vmem:[%s5] sm:$0x1]
      %v1508 = vlaneseq
      %v1509 = vshrl.u32 %v1508, 7
      %v1510 = vsub.s32 0, %v1509
      %v1511 = vrot.slane %v1506, %v1510
      %v1513 = vmul.f32 %v1505, %v1511
      %v1514 = vld [vmem:[%s6] sm:$0x1]
      %v1516 = vlaneseq
      %v1517 = vshrl.u32 %v1516, 7
      %v1518 = vsub.s32 0, %v1517
      %v1519 = vrot.slane %v1514, %v1518
      %v1521 = vadd.f32 %v1513, %v1519
      %v1522 = vsel %vm450, %v1521, 0.0
      %1523 = vst [vmem:[%s276] sm:$0xff] %v1522
      %p1524 = scmp.lt.s32.totalorder %s18, 1
      %s1525 = scalar_select %p1524, %s18, 1
      %s1526 = smul.addr %s1525, 8
      %s1527 = scalar_lea.vmem %s7, %s1526
      // Predicated region
      $region49: #{unit_model_encoder_forward.1} parent=47 // pred_check
        %p1528 = pneg %p188
      $region50: #{unit_model_encoder_forward.1} parent=47 // pred_check_branch
        %1530 = sbr.rel (%p1528) target = $region52
      $region51: #{unit_model_encoder_forward.1} parent=47 // pred_region
        _
      $region52: #{unit_model_encoder_forward.1} parent=47 // pred_fallthru
        _
    $region48: #{unit_model_encoder_forward.1} parent=5 // pred_fallthru
      _
    %p1531 = scmp.le.s32.totalorder 2, %s13
    // Predicated region
    $region53: #{unit_model_encoder_forward.1} parent=5 // pred_check
      %p1532 = pneg %p1531
    $region54: #{unit_model_encoder_forward.1} parent=5 // pred_check_branch
      %1534 = sbr.rel (%p1532) target = $region56
    $region55: #{unit_model_encoder_forward.1} parent=5 // pred_region
      %s1535 = ssub.s32 %s13, 2
      // Predicated region
      $region57: #{unit_model_encoder_forward.1} parent=55 // pred_check
        %p1536 = pneg %p194
      $region58: #{unit_model_encoder_forward.1} parent=55 // pred_check_branch
        %1538 = sbr.rel (%p1536) target = $region60
      $region59: #{unit_model_encoder_forward.1} parent=55 // pred_region
        %p1539 = scmp.lt.s32.totalorder %s19, 1
        %s1540 = scalar_select %p1539, %s19, 1
        %s1541 = smul.addr %s1540, 8
        %s1542 = scalar_lea.vmem %s7, %s1541
      $region60: #{unit_model_encoder_forward.1} parent=55 // pred_fallthru
        _
    $region56: #{unit_model_encoder_forward.1} parent=5 // pred_fallthru
      _
  $region6: #{unit_model_encoder_forward.1} parent=0 // loop_footer
    %s17 = sadd.s32 1, %s13
  $region7: #{unit_model_encoder_forward.1} parent=0 // loop_footer_branch
    %12 = sbr.rel target = $region3
  $region8: #{unit_model_encoder_forward.1} parent=0 // loop_exit
    _

</llo_original>
